<compile_context>
chip_gen: v5e
topology: v5e:2x2
jax: 0.10.0
libtpu: 0.0.40
codegen_flags: <defaults>
</compile_context>

<pallas_src>
import jax
import jax.numpy as jnp
from jax import lax
from jax.experimental import pallas as pl
from jax.experimental.pallas import tpu as pltpu


def _round_up(x, m):
    return (x + m - 1) // m * m


def _pad2d(a, rows, cols):
    r, c = a.shape
    if r == rows and c == cols:
        return a
    return jnp.pad(a, ((0, rows - r), (0, cols - c)))


def _largest_divisor_leq(n, cap):
    for cand in range(min(cap, n), 0, -1):
        if n % cand == 0:
            return cand
    return 1


def _pick_vmem_limit():
    # 96 MiB on 128-MiB parts (v5e/v6e), 40 MiB on 64-MiB parts (v7x).
    try:
        cap = int(pltpu.get_tpu_info().vmem_capacity_bytes)
    except Exception:
        cap = 128 * 1024 * 1024
    return 96 * 1024 * 1024 if cap >= 96 * 1024 * 1024 else 40 * 1024 * 1024


VMEM_LIMIT_BYTES = _pick_vmem_limit()


# ----------------------------------------------------------------------------
# Tiled fused matmul + BN + ReLU  (patch embedding)
# ----------------------------------------------------------------------------
def matmul_bn_relu(x, w, scale, shift, *, out_dtype=None, tm=512, tn=512, tk=512):
    """relu((x @ w) * scale + shift).  x:(M,K) w:(K,N) scale/shift:(1,N)."""
    if out_dtype is None:
        out_dtype = x.dtype
    M, K = x.shape
    N = w.shape[1]
    tm = min(tm, _round_up(M, 8))
    tk = min(tk, _round_up(K, 128))
    tn = min(tn, _round_up(N, 128))
    Mp, Kp, Np = _round_up(M, tm), _round_up(K, tk), _round_up(N, tn)
    xp = _pad2d(x, Mp, Kp)
    wp = _pad2d(w, Kp, Np)
    sp = _pad2d(scale.astype(jnp.float32), 1, Np)
    bp = _pad2d(shift.astype(jnp.float32), 1, Np)

    def kernel(x_ref, w_ref, s_ref, b_ref, o_ref, acc_ref):
        @pl.when(pl.program_id(2) == 0)
        def _():
            acc_ref[...] = jnp.zeros_like(acc_ref)

        acc_ref[...] += jnp.dot(x_ref[...], w_ref[...],
                                preferred_element_type=jnp.float32)

        @pl.when(pl.program_id(2) == pl.num_programs(2) - 1)
        def _():
            y = jnp.maximum(acc_ref[...] * s_ref[...] + b_ref[...], 0.0)
            o_ref[...] = y.astype(o_ref.dtype)

    out = pl.pallas_call(
        kernel,
        out_shape=jax.ShapeDtypeStruct((Mp, Np), out_dtype),
        grid=(Mp // tm, Np // tn, Kp // tk),
        in_specs=[
            pl.BlockSpec((tm, tk), lambda i, j, k: (i, k)),
            pl.BlockSpec((tk, tn), lambda i, j, k: (k, j)),
            pl.BlockSpec((1, tn), lambda i, j, k: (0, j)),
            pl.BlockSpec((1, tn), lambda i, j, k: (0, j)),
        ],
        out_specs=pl.BlockSpec((tm, tn), lambda i, j, k: (i, j)),
        scratch_shapes=[pltpu.VMEM((tm, tn), jnp.float32)],
        compiler_params=pltpu.CompilerParams(
            dimension_semantics=("parallel", "parallel", "arbitrary"),
            vmem_limit_bytes=VMEM_LIMIT_BYTES),
    )(xp, wp, sp, bp)
    return out[:M, :N]


# ----------------------------------------------------------------------------
# Fused mixer block: depthwise kxk + BN + ReLU + residual  -> 1x1 + BN + ReLU
# ----------------------------------------------------------------------------
def mixer_block(x, w_dw, scale_a, shift_a, w_pw, scale_b, shift_b, ksize,
                *, row_chunk=4):
    """y = relu(bn_b(conv1x1( x + relu(bn_a(dwconv_kxk(x))) ))).

    x:(B,H,W,C) NHWC (C multiple of 128).  w_dw:(k*k,C).  w_pw:(C,C).
    One pallas_call per block; the depthwise intermediate never leaves VMEM.
    """
    B, H, W, C = x.shape
    k = ksize
    pad = (k - 1) // 2                         # 'same' padding, odd kernel
    c0 = _round_up(pad, 8) if pad > 0 else 0   # aligned interior column offset
    Wtot = c0 + W + pad
    Hq = H + 2 * pad
    rc = _largest_divisor_leq(H, max(1, row_chunk))
    nchunks = H // rc

    cdtype = x.dtype                           # bf16 on v6e/v7x, f32 on v5e
    w_dw = w_dw.astype(cdtype)
    w_pw = w_pw.astype(cdtype)
    scale_a = scale_a.astype(jnp.float32)
    shift_a = shift_a.astype(jnp.float32)
    scale_b = scale_b.astype(jnp.float32)
    shift_b = shift_b.astype(jnp.float32)

    def kernel(x_ref, wdw_ref, sa_ref, ba_ref, wpw_ref, sb_ref, bb_ref,
               o_ref, xv_ref, t_ref):
        # Stage the image once into the haloed scratch.  Only the thin halo
        # strips are zeroed (every step, so it stays correct if the batch axis
        # is split across TensorCores); the interior is stored at a
        # multiple-of-8 column offset -> aligned store / aligned residual read.
        if pad > 0:
            zrow = jnp.zeros((pad, Wtot, C), cdtype)
            xv_ref[0:pad, :, :] = zrow
            xv_ref[pad + H:pad + H + pad, :, :] = zrow
            xv_ref[:, 0:c0, :] = jnp.zeros((Hq, c0, C), cdtype)
            xv_ref[:, c0 + W:c0 + W + pad, :] = jnp.zeros((Hq, pad, C), cdtype)
        xv_ref[pad:pad + H, c0:c0 + W, :] = x_ref[0].astype(cdtype)

        # Hoisted per-channel BN vectors (loaded once per image).
        sa = sa_ref[0]          # (C,) f32
        ba = ba_ref[0]

        def chunk(r):
            # r is either a Python int (single chunk) or a fori counter.
            r0 = r * rc
            acc = jnp.zeros((rc, W, C), cdtype)
            for dy in range(k):                       # static taps
                for dx in range(k):
                    a = xv_ref[pl.ds(r0 + dy, rc),
                               pl.ds(c0 - pad + dx, W), :]
                    acc = acc + a * wdw_ref[dy * k + dx]
            # depthwise BN + ReLU (f32), residual add in compute dtype.
            z = jnp.maximum(acc.astype(jnp.float32) * sa + ba, 0.0)
            resid = xv_ref[pl.ds(r0 + pad, rc), pl.ds(c0, W), :]
            t_ref[pl.ds(r0, rc), :, :] = resid + z.astype(cdtype)

        if nchunks == 1:
            chunk(0)
        else:
            def body(r, carry):
                chunk(r)
                return carry
            lax.fori_loop(0, nchunks, body, 0)

        # ONE pointwise 1x1 matmul per image (weight streamed once through the
        # MXU), then BN + ReLU and a lane-dense store.
        t2 = t_ref[...].reshape(H * W, C)
        y = jnp.dot(t2, wpw_ref[...], preferred_element_type=jnp.float32)
        y = jnp.maximum(y * sb_ref[...] + bb_ref[...], 0.0)
        o_ref[0] = y.reshape(H, W, C).astype(o_ref.dtype)

    return pl.pallas_call(
        kernel,
        out_shape=jax.ShapeDtypeStruct((B, H, W, C), x.dtype),
        grid=(B,),
        in_specs=[
            pl.BlockSpec((1, H, W, C), lambda b: (b, 0, 0, 0)),
            pl.BlockSpec((k * k, C), lambda b: (0, 0)),
            pl.BlockSpec((1, C), lambda b: (0, 0)),
            pl.BlockSpec((1, C), lambda b: (0, 0)),
            pl.BlockSpec((C, C), lambda b: (0, 0)),
            pl.BlockSpec((1, C), lambda b: (0, 0)),
            pl.BlockSpec((1, C), lambda b: (0, 0)),
        ],
        out_specs=pl.BlockSpec((1, H, W, C), lambda b: (b, 0, 0, 0)),
        scratch_shapes=[pltpu.VMEM((Hq, Wtot, C), cdtype),
                        pltpu.VMEM((H, W, C), cdtype)],
        compiler_params=pltpu.CompilerParams(
            dimension_semantics=("parallel",),
            vmem_limit_bytes=VMEM_LIMIT_BYTES),
    )(x, w_dw, scale_a, shift_a, w_pw, scale_b, shift_b)


# ----------------------------------------------------------------------------
# Streamed global-max pool + Linear
# ----------------------------------------------------------------------------
def pool_fc(x, w_fc, b_fc):
    """Linear(max over spatial).  x:(B,HW,C) w_fc:(C,NC) b_fc:(1,NC)."""
    B, HW, C = x.shape
    NC = w_fc.shape[1]
    NCp = max(128, _round_up(NC, 128))
    Bp = _round_up(B, 8)                      # sublane-dense output store
    if Bp != B:
        x = jnp.pad(x, ((0, Bp - B), (0, 0), (0, 0)))
    wp = _pad2d(w_fc.astype(jnp.float32), C, NCp)
    bp = _pad2d(b_fc.astype(jnp.float32), 1, NCp)

    # largest multiple-of-8 divisor of HW up to 512, else the whole axis.
    th = None
    for cand in range(min(512, HW), 7, -1):
        if HW % cand == 0 and cand % 8 == 0:
            th = cand
            break
    if th is None:
        th = HW
    nt = HW // th

    def kernel(x_ref, w_ref, b_ref, o_ref, mx_ref):
        @pl.when(pl.program_id(0) == 0)
        def _():
            mx_ref[...] = jnp.full_like(mx_ref, -jnp.inf)

        # running max kept in the input dtype (max is exact in bf16).
        mx_ref[...] = jnp.maximum(mx_ref[...], jnp.max(x_ref[...], axis=1))

        @pl.when(pl.program_id(0) == pl.num_programs(0) - 1)
        def _():
            o_ref[...] = (jnp.dot(mx_ref[...].astype(jnp.float32), w_ref[...],
                                  preferred_element_type=jnp.float32)
                          + b_ref[...])

    out = pl.pallas_call(
        kernel,
        out_shape=jax.ShapeDtypeStruct((Bp, NCp), jnp.float32),
        grid=(nt,),
        in_specs=[
            pl.BlockSpec((Bp, th, C), lambda i: (0, i, 0)),
            pl.BlockSpec((C, NCp), lambda i: (0, 0)),
            pl.BlockSpec((1, NCp), lambda i: (0, 0)),
        ],
        out_specs=pl.BlockSpec((Bp, NCp), lambda i: (0, 0)),
        scratch_shapes=[pltpu.VMEM((Bp, C), x.dtype)],
        compiler_params=pltpu.CompilerParams(
            dimension_semantics=("arbitrary",),
            vmem_limit_bytes=VMEM_LIMIT_BYTES),
    )(x, wp, bp)
    return out[:B, :NC]


# ----------------------------------------------------------------------------
# ConvMixer forward (glue in plain JAX, hot paths in Pallas)
# ----------------------------------------------------------------------------
def convmixer_forward(x_nchw, params, cfg, compute_dtype=jnp.float32):
    B, Cin, H, W = x_nchw.shape
    p, dim, k, depth = cfg["patch"], cfg["dim"], cfg["ksize"], cfg["depth"]
    Ho, Wo = H // p, W // p

    # Pad the channel dim to a multiple of 128 so C maps densely onto TPU
    # lanes.  Zero padding is exact: padded channels stay exactly 0 through
    # every block and contribute nothing to the classifier.
    dimp = max(128, _round_up(dim, 128))
    pc = dimp - dim

    def _padc(a):
        return a if pc == 0 else jnp.pad(a, [(0, 0)] * (a.ndim - 1) + [(0, pc)])

    w_patch = _padc(params["w_patch"])
    scale1, shift1 = _padc(params["scale1"]), _padc(params["shift1"])
    w_dw = [_padc(w) for w in params["w_dw"]]
    scale_a = [_padc(s) for s in params["scale_a"]]
    shift_a = [_padc(s) for s in params["shift_a"]]
    w_pw = [(jnp.pad(w, ((0, pc), (0, pc))) if pc else w) for w in params["w_pw"]]
    scale_b = [_padc(s) for s in params["scale_b"]]
    shift_b = [_padc(s) for s in params["shift_b"]]
    w_fc = jnp.pad(params["w_fc"], ((0, pc), (0, 0))) if pc else params["w_fc"]

    x = jnp.transpose(x_nchw, (0, 2, 3, 1))      # NCHW -> NHWC
    # patch embedding: non-overlapping patch extraction -> tiled matmul+BN+ReLU
    # TODO(synk): fuse this transpose into the pallas_call input DMA
    #             (allow_input_fusion / in-kernel flattening) to avoid the
    #             one-off HBM copy of the input image.
    patches = (
        x.reshape(B, Ho, p, Wo, p, Cin)
        .transpose(0, 1, 3, 2, 4, 5)
        .reshape(B * Ho * Wo, p * p * Cin)
    ).astype(compute_dtype)
    y = matmul_bn_relu(patches, w_patch.astype(compute_dtype), scale1, shift1,
                       out_dtype=compute_dtype)
    y = y.reshape(B, Ho, Wo, dimp)

    # mixer blocks: one fused Pallas kernel per block
    for d in range(depth):
        y = mixer_block(y, w_dw[d], scale_a[d], shift_a[d],
                        w_pw[d], scale_b[d], shift_b[d], k)

    # AdaptiveMaxPool2d(1) + Flatten + Linear
    out = pool_fc(y.reshape(B, Ho * Wo, dimp), w_fc, params["b_fc"])
    return out.astype(jnp.float32)


# ----------------------------------------------------------------------------
# Pure-JAX reference (for correctness check)
# ----------------------------------------------------------------------------
def reference_forward(x_nchw, params, cfg):
    p, dim, k, depth = cfg["patch"], cfg["dim"], cfg["ksize"], cfg["depth"]
    Cin = x_nchw.shape[1]
    x = jnp.transpose(x_nchw, (0, 2, 3, 1))
    y = jax.lax.conv_general_dilated(
        x, params["w_patch"].reshape(p, p, Cin, dim),
        window_strides=(p, p), padding="VALID",
        dimension_numbers=("NHWC", "HWIO", "NHWC"))
    y = jnp.maximum(y * params["scale1"] + params["shift1"], 0.0)
    for d in range(depth):
        z = jax.lax.conv_general_dilated(
            y, params["w_dw"][d].reshape(k, k, 1, dim),
            window_strides=(1, 1), padding="SAME",
            dimension_numbers=("NHWC", "HWIO", "NHWC"),
            feature_group_count=dim)
        z = jnp.maximum(z * params["scale_a"][d] + params["shift_a"][d], 0.0)
        y = y + z
        z = jnp.einsum("bhwc,cd->bhwd", y, params["w_pw"][d])
        y = jnp.maximum(z * params["scale_b"][d] + params["shift_b"][d], 0.0)
    pooled = jnp.max(y, axis=(1, 2))
    return pooled @ params["w_fc"] + params["b_fc"]


# ----------------------------------------------------------------------------
# Deterministic parameter init (BN folded to inference-mode scale/shift)
# ----------------------------------------------------------------------------
def fold_bn(conv_bias, gamma, beta, mean, var, eps=1e-5):
    scale = gamma / jnp.sqrt(var + eps)
    shift = beta + (conv_bias - mean) * scale
    return scale.reshape(1, -1), shift.reshape(1, -1)


def init_params(key, cfg, in_channels, num_classes):
    p, dim, k, depth = cfg["patch"], cfg["dim"], cfg["ksize"], cfg["depth"]
    keys = iter(jax.random.split(key, 8 * (depth + 2)))

    def bn_params(kk, c):
        k1, k2, k3, k4 = jax.random.split(kk, 4)
        gamma = 0.5 + jax.random.uniform(k1, (c,), jnp.float32)
        beta = 0.1 * jax.random.normal(k2, (c,), jnp.float32)
        mean = 0.1 * jax.random.normal(k3, (c,), jnp.float32)
        var = 0.5 + jax.random.uniform(k4, (c,), jnp.float32)
        return gamma, beta, mean, var

    params = {}
    w1 = 0.1 * jax.random.normal(next(keys), (p, p, in_channels, dim), jnp.float32)
    b1 = 0.1 * jax.random.normal(next(keys), (dim,), jnp.float32)
    params["w_patch"] = w1.reshape(p * p * in_channels, dim)
    params["scale1"], params["shift1"] = fold_bn(b1, *bn_params(next(keys), dim))

    params["w_dw"], params["scale_a"], params["shift_a"] = [], [], []
    params["w_pw"], params["scale_b"], params["shift_b"] = [], [], []
    for _ in range(depth):
        wd = 0.1 * jax.random.normal(next(keys), (k, k, dim), jnp.float32)
        bd = 0.1 * jax.random.normal(next(keys), (dim,), jnp.float32)
        sa, ba = fold_bn(bd, *bn_params(next(keys), dim))
        params["w_dw"].append(wd.reshape(k * k, dim))
        params["scale_a"].append(sa)
        params["shift_a"].append(ba)

        wp = 0.1 * jax.random.normal(next(keys), (dim, dim), jnp.float32)
        bp = 0.1 * jax.random.normal(next(keys), (dim,), jnp.float32)
        sb, bb = fold_bn(bp, *bn_params(next(keys), dim))
        params["w_pw"].append(wp)
        params["scale_b"].append(sb)
        params["shift_b"].append(bb)

    params["w_fc"] = 0.1 * jax.random.normal(next(keys), (dim, num_classes), jnp.float32)
    params["b_fc"] = 0.1 * jax.random.normal(next(keys), (1, num_classes), jnp.float32)
    return params


# ----------------------------------------------------------------------------
if __name__ == "__main__":
    cfg = dict(patch=7, dim=64, ksize=5, depth=2)
    in_channels, num_classes = 3, 10
    B, H, W = 2, 56, 56                      # -> 8x8 patch grid

    key = jax.random.PRNGKey(0)
    k_x, k_p = jax.random.split(key)
    x = jax.random.normal(k_x, (B, in_channels, H, W), jnp.float32)  # NCHW input
    params = init_params(k_p, cfg, in_channels, num_classes)

    ref = reference_forward(x, params, cfg)

    # f32 path: semantics check against the pure-JAX reference.
    fwd_f32 = jax.jit(lambda xb: convmixer_forward(xb, params, cfg, jnp.float32))
    out = jax.block_until_ready(fwd_f32(x))
    assert out.shape == (B, num_classes)
    assert jnp.allclose(out, ref, atol=1e-3, rtol=1e-3), (
        f"f32 max abs err {float(jnp.max(jnp.abs(out - ref)))}"
    )

    # bf16 path (recommended on v6e/v7x): compiles/runs, loose sanity check.
    fwd_bf16 = jax.jit(lambda xb: convmixer_forward(xb, params, cfg, jnp.bfloat16))
    out_bf16 = jax.block_until_ready(fwd_bf16(x))
    assert out_bf16.shape == (B, num_classes)
    assert bool(jnp.all(jnp.isfinite(out_bf16)))
    assert jnp.allclose(out_bf16, ref, atol=0.5, rtol=0.15), (
        f"bf16 max abs err {float(jnp.max(jnp.abs(out_bf16 - ref)))}"
    )

    print("KERNEL_OK")
</pallas_src>

<mosaic_0001>
module attributes {stable_mosaic.version = 11 : i64} {
  func.func @kernel(%arg0: i32, %arg1: i32, %arg2: i32, %arg3: memref<128x256xf32, #tpu.memory_space<vmem>>, %arg4: memref<256x128xf32, #tpu.memory_space<vmem>>, %arg5: memref<1x128xf32, #tpu.memory_space<vmem>>, %arg6: memref<1x128xf32, #tpu.memory_space<vmem>>, %arg7: memref<128x128xf32, #tpu.memory_space<vmem>>, %arg8: memref<128x128xf32, #tpu.memory_space<vmem>>) attributes {dimension_semantics = [#tpu.dimension_semantics<parallel>, #tpu.dimension_semantics<parallel>, #tpu.dimension_semantics<arbitrary>], iteration_bounds = array<i64: 1, 1, 1>, scalar_prefetch = 0 : i64, scratch_operands = 1 : i64, tpu.core_type = #tpu.core_type<tc>, window_params = [{transform_indices = @transform_0, window_bounds = array<i64: 128, 256>}, {transform_indices = @transform_1, window_bounds = array<i64: 256, 128>}, {transform_indices = @transform_2, window_bounds = array<i64: 1, 128>}, {transform_indices = @transform_3, window_bounds = array<i64: 1, 128>}, {transform_indices = @transform_4, window_bounds = array<i64: 128, 128>}]} {
    %c0_i32 = arith.constant 0 : i32
    %0 = arith.cmpi eq, %arg2, %c0_i32 : i32
    %1 = arith.extui %0 : i1 to i32
    %c0_i32_0 = arith.constant 0 : i32
    %2 = arith.cmpi ne, %1, %c0_i32_0 : i32
    scf.if %2 {
      %cst_10 = arith.constant 0.000000e+00 : f32
      %12 = vector.broadcast %cst_10 : f32 to vector<128x128xf32>
      %c0_11 = arith.constant 0 : index
      %c0_12 = arith.constant 0 : index
      %13 = vector.load %arg8[%c0_11, %c0_12] : memref<128x128xf32, #tpu.memory_space<vmem>>, vector<128x128xf32>
      tpu.vector_store %arg8[%c0_11, %c0_12], %12 {strides = array<i32>} : memref<128x128xf32, #tpu.memory_space<vmem>>, vector<128x128xf32>,
    } else {
    }
    %c0 = arith.constant 0 : index
    %c0_1 = arith.constant 0 : index
    %3 = vector.load %arg8[%c0, %c0_1] : memref<128x128xf32, #tpu.memory_space<vmem>>, vector<128x128xf32>
    %c0_2 = arith.constant 0 : index
    %c0_3 = arith.constant 0 : index
    %4 = vector.load %arg3[%c0_2, %c0_3] : memref<128x256xf32, #tpu.memory_space<vmem>>, vector<128x256xf32>
    %c0_4 = arith.constant 0 : index
    %c0_5 = arith.constant 0 : index
    %5 = vector.load %arg4[%c0_4, %c0_5] : memref<256x128xf32, #tpu.memory_space<vmem>>, vector<256x128xf32>
    %cst = arith.constant dense<0.000000e+00> : vector<128x128xf32>
    %6 = tpu.matmul %4, %5, %cst {dimension_numbers = #tpu.dot_dimension_numbers<[1], [0], [0], [1], [0, 0, 1, 1], [], []>} : vector<128x256xf32>, vector<256x128xf32>, vector<128x128xf32> -> vector<128x128xf32>
    %7 = arith.addf %3, %6 : vector<128x128xf32>
    %c0_6 = arith.constant 0 : index
    %c0_7 = arith.constant 0 : index
    %8 = vector.load %arg8[%c0_6, %c0_7] : memref<128x128xf32, #tpu.memory_space<vmem>>, vector<128x128xf32>
    tpu.vector_store %arg8[%c0_6, %c0_7], %7 {strides = array<i32>} : memref<128x128xf32, #tpu.memory_space<vmem>>, vector<128x128xf32>,
    %c0_i32_8 = arith.constant 0 : i32
    %9 = arith.cmpi eq, %arg2, %c0_i32_8 : i32
    %10 = arith.extui %9 : i1 to i32
    %c0_i32_9 = arith.constant 0 : i32
    %11 = arith.cmpi ne, %10, %c0_i32_9 : i32
    scf.if %11 {
      %c0_10 = arith.constant 0 : index
      %c0_11 = arith.constant 0 : index
      %12 = vector.load %arg8[%c0_10, %c0_11] : memref<128x128xf32, #tpu.memory_space<vmem>>, vector<128x128xf32>
      %c0_12 = arith.constant 0 : index
      %c0_13 = arith.constant 0 : index
      %13 = vector.load %arg5[%c0_12, %c0_13] : memref<1x128xf32, #tpu.memory_space<vmem>>, vector<1x128xf32>
      %14 = vector.broadcast %13 : vector<1x128xf32> to vector<128x128xf32>
      %15 = arith.mulf %12, %14 : vector<128x128xf32>
      %c0_14 = arith.constant 0 : index
      %c0_15 = arith.constant 0 : index
      %16 = vector.load %arg6[%c0_14, %c0_15] : memref<1x128xf32, #tpu.memory_space<vmem>>, vector<1x128xf32>
      %17 = vector.broadcast %16 : vector<1x128xf32> to vector<128x128xf32>
      %18 = arith.addf %15, %17 : vector<128x128xf32>
      %cst_16 = arith.constant 0.000000e+00 : f32
      %19 = vector.broadcast %cst_16 : f32 to vector<128x128xf32>
      %20 = arith.maximumf %18, %19 : vector<128x128xf32>
      %c0_17 = arith.constant 0 : index
      %c0_18 = arith.constant 0 : index
      %21 = vector.load %arg7[%c0_17, %c0_18] : memref<128x128xf32, #tpu.memory_space<vmem>>, vector<128x128xf32>
      tpu.vector_store %arg7[%c0_17, %c0_18], %20 {strides = array<i32>} : memref<128x128xf32, #tpu.memory_space<vmem>>, vector<128x128xf32>,
    } else {
    }
    return
  }
  func.func @transform_0(%arg0: i32, %arg1: i32, %arg2: i32) -> (i32, i32) {
    %c0_i32 = arith.constant 0 : i32
    return %arg0, %arg2 : i32, i32
  }
  func.func @transform_1(%arg0: i32, %arg1: i32, %arg2: i32) -> (i32, i32) {
    %c0_i32 = arith.constant 0 : i32
    return %arg2, %arg1 : i32, i32
  }
  func.func @transform_2(%arg0: i32, %arg1: i32, %arg2: i32) -> (i32, i32) {
    %c0_i32 = arith.constant 0 : i32
    %c0_i32_0 = arith.constant 0 : i32
    return %c0_i32, %arg1 : i32, i32
  }
  func.func @transform_3(%arg0: i32, %arg1: i32, %arg2: i32) -> (i32, i32) {
    %c0_i32 = arith.constant 0 : i32
    %c0_i32_0 = arith.constant 0 : i32
    return %c0_i32, %arg1 : i32, i32
  }
  func.func @transform_4(%arg0: i32, %arg1: i32, %arg2: i32) -> (i32, i32) {
    %c0_i32 = arith.constant 0 : i32
    return %arg0, %arg1 : i32, i32
  }
}

module attributes {stable_mosaic.version = 11 : i64} {
  func.func @kernel(%arg0: i32, %arg1: memref<1x8x8x128xf32, #tpu.memory_space<vmem>>, %arg2: memref<25x128xf32, #tpu.memory_space<vmem>>, %arg3: memref<1x128xf32, #tpu.memory_space<vmem>>, %arg4: memref<1x128xf32, #tpu.memory_space<vmem>>, %arg5: memref<128x128xf32, #tpu.memory_space<vmem>>, %arg6: memref<1x128xf32, #tpu.memory_space<vmem>>, %arg7: memref<1x128xf32, #tpu.memory_space<vmem>>, %arg8: memref<1x8x8x128xf32, #tpu.memory_space<vmem>>, %arg9: memref<12x18x128xf32, #tpu.memory_space<vmem>>, %arg10: memref<8x8x128xf32, #tpu.memory_space<vmem>>) attributes {dimension_semantics = [#tpu.dimension_semantics<parallel>], iteration_bounds = array<i64: 2>, scalar_prefetch = 0 : i64, scratch_operands = 2 : i64, tpu.core_type = #tpu.core_type<tc>, window_params = [{transform_indices = @transform_0, window_bounds = array<i64: 1, 8, 8, 128>}, {pipeline_mode = #tpu.pipeline_mode<synchronous>, transform_indices = @transform_1, window_bounds = array<i64: 25, 128>}, {pipeline_mode = #tpu.pipeline_mode<synchronous>, transform_indices = @transform_2, window_bounds = array<i64: 1, 128>}, {pipeline_mode = #tpu.pipeline_mode<synchronous>, transform_indices = @transform_3, window_bounds = array<i64: 1, 128>}, {pipeline_mode = #tpu.pipeline_mode<synchronous>, transform_indices = @transform_4, window_bounds = array<i64: 128, 128>}, {pipeline_mode = #tpu.pipeline_mode<synchronous>, transform_indices = @transform_5, window_bounds = array<i64: 1, 128>}, {pipeline_mode = #tpu.pipeline_mode<synchronous>, transform_indices = @transform_6, window_bounds = array<i64: 1, 128>}, {transform_indices = @transform_7, window_bounds = array<i64: 1, 8, 8, 128>}]} {
    %cst = arith.constant 0.000000e+00 : f32
    %0 = vector.broadcast %cst : f32 to vector<2x18x128xf32>
    %c0 = arith.constant 0 : index
    %c0_0 = arith.constant 0 : index
    %c0_1 = arith.constant 0 : index
    %1 = vector.load %arg9[%c0, %c0_0, %c0_1] : memref<12x18x128xf32, #tpu.memory_space<vmem>>, vector<2x18x128xf32>
    tpu.vector_store %arg9[%c0, %c0_0, %c0_1], %0 {strides = array<i32>} : memref<12x18x128xf32, #tpu.memory_space<vmem>>, vector<2x18x128xf32>,
    %c10 = arith.constant 10 : index
    %c0_2 = arith.constant 0 : index
    %c0_3 = arith.constant 0 : index
    %2 = vector.load %arg9[%c10, %c0_2, %c0_3] : memref<12x18x128xf32, #tpu.memory_space<vmem>>, vector<2x18x128xf32>
    tpu.vector_store %arg9[%c10, %c0_2, %c0_3], %0 {strides = array<i32>} : memref<12x18x128xf32, #tpu.memory_space<vmem>>, vector<2x18x128xf32>,
    %cst_4 = arith.constant 0.000000e+00 : f32
    %3 = vector.broadcast %cst_4 : f32 to vector<12x8x128xf32>
    %c0_5 = arith.constant 0 : index
    %c0_6 = arith.constant 0 : index
    %c0_7 = arith.constant 0 : index
    %4 = vector.load %arg9[%c0_5, %c0_6, %c0_7] : memref<12x18x128xf32, #tpu.memory_space<vmem>>, vector<12x8x128xf32>
    tpu.vector_store %arg9[%c0_5, %c0_6, %c0_7], %3 {strides = array<i32>} : memref<12x18x128xf32, #tpu.memory_space<vmem>>, vector<12x8x128xf32>,
    %cst_8 = arith.constant 0.000000e+00 : f32
    %5 = vector.broadcast %cst_8 : f32 to vector<12x2x128xf32>
    %c0_9 = arith.constant 0 : index
    %c16 = arith.constant 16 : index
    %c0_10 = arith.constant 0 : index
    %6 = vector.load %arg9[%c0_9, %c16, %c0_10] : memref<12x18x128xf32, #tpu.memory_space<vmem>>, vector<12x2x128xf32>
    tpu.vector_store %arg9[%c0_9, %c16, %c0_10], %5 {strides = array<i32>} : memref<12x18x128xf32, #tpu.memory_space<vmem>>, vector<12x2x128xf32>,
    %c0_11 = arith.constant 0 : index
    %c0_12 = arith.constant 0 : index
    %c0_13 = arith.constant 0 : index
    %c0_14 = arith.constant 0 : index
    %7 = vector.load %arg1[%c0_11, %c0_12, %c0_13, %c0_14] : memref<1x8x8x128xf32, #tpu.memory_space<vmem>>, vector<1x8x8x128xf32>
    %8 = vector.shape_cast %7 : vector<1x8x8x128xf32> to vector<8x8x128xf32>
    %c2 = arith.constant 2 : index
    %c8 = arith.constant 8 : index
    %c0_15 = arith.constant 0 : index
    %9 = vector.load %arg9[%c2, %c8, %c0_15] : memref<12x18x128xf32, #tpu.memory_space<vmem>>, vector<8x8x128xf32>
    tpu.vector_store %arg9[%c2, %c8, %c0_15], %8 {strides = array<i32>} : memref<12x18x128xf32, #tpu.memory_space<vmem>>, vector<8x8x128xf32>,
    %c0_16 = arith.constant 0 : index
    %c0_17 = arith.constant 0 : index
    %10 = vector.load %arg3[%c0_16, %c0_17] : memref<1x128xf32, #tpu.memory_space<vmem>>, vector<1x128xf32>
    %11 = vector.shape_cast %10 : vector<1x128xf32> to vector<128xf32>
    %c0_18 = arith.constant 0 : index
    %c0_19 = arith.constant 0 : index
    %12 = vector.load %arg4[%c0_18, %c0_19] : memref<1x128xf32, #tpu.memory_space<vmem>>, vector<1x128xf32>
    %13 = vector.shape_cast %12 : vector<1x128xf32> to vector<128xf32>
    %c0_i32 = arith.constant 0 : i32
    %c2_i32 = arith.constant 2 : i32
    %14 = arith.addi %c0_i32, %c2_i32 : i32
    %c1_i32 = arith.constant 1 : i32
    scf.for %arg11 = %c0_i32 to %14 step %c1_i32  : i32 {
      %c4_i32 = arith.constant 4 : i32
      %31 = arith.muli %arg11, %c4_i32 : i32
      %cst_36 = arith.constant 0.000000e+00 : f32
      %32 = vector.broadcast %cst_36 : f32 to vector<4x8x128xf32>
      %c0_i32_37 = arith.constant 0 : i32
      %33 = arith.addi %31, %c0_i32_37 : i32
      %34 = arith.index_cast %33 : i32 to index
      %c6 = arith.constant 6 : index
      %c0_38 = arith.constant 0 : index
      %35 = vector.load %arg9[%34, %c6, %c0_38] : memref<12x18x128xf32, #tpu.memory_space<vmem>>, vector<4x8x128xf32>
      %c0_39 = arith.constant 0 : index
      %c0_40 = arith.constant 0 : index
      %36 = vector.load %arg2[%c0_39, %c0_40] : memref<25x128xf32, #tpu.memory_space<vmem>>, vector<1x128xf32>
      %37 = vector.shape_cast %36 : vector<1x128xf32> to vector<128xf32>
      %38 = vector.shape_cast %37 : vector<128xf32> to vector<1x1x128xf32>
      %39 = vector.broadcast %38 : vector<1x1x128xf32> to vector<4x8x128xf32>
      %40 = arith.mulf %35, %39 : vector<4x8x128xf32>
      %41 = arith.addf %32, %40 : vector<4x8x128xf32>
      %c0_i32_41 = arith.constant 0 : i32
      %42 = arith.addi %31, %c0_i32_41 : i32
      %43 = arith.index_cast %42 : i32 to index
      %c7 = arith.constant 7 : index
      %c0_42 = arith.constant 0 : index
      %44 = vector.load %arg9[%43, %c7, %c0_42] : memref<12x18x128xf32, #tpu.memory_space<vmem>>, vector<4x8x128xf32>
      %c1 = arith.constant 1 : index
      %c0_43 = arith.constant 0 : index
      %45 = vector.load %arg2[%c1, %c0_43] : memref<25x128xf32, #tpu.memory_space<vmem>>, vector<1x128xf32>
      %46 = vector.shape_cast %45 : vector<1x128xf32> to vector<128xf32>
      %47 = vector.shape_cast %46 : vector<128xf32> to vector<1x1x128xf32>
      %48 = vector.broadcast %47 : vector<1x1x128xf32> to vector<4x8x128xf32>
      %49 = arith.mulf %44, %48 : vector<4x8x128xf32>
      %50 = arith.addf %41, %49 : vector<4x8x128xf32>
      %c0_i32_44 = arith.constant 0 : i32
      %51 = arith.addi %31, %c0_i32_44 : i32
      %52 = arith.index_cast %51 : i32 to index
      %c8_45 = arith.constant 8 : index
      %c0_46 = arith.constant 0 : index
      %53 = vector.load %arg9[%52, %c8_45, %c0_46] : memref<12x18x128xf32, #tpu.memory_space<vmem>>, vector<4x8x128xf32>
      %c2_47 = arith.constant 2 : index
      %c0_48 = arith.constant 0 : index
      %54 = vector.load %arg2[%c2_47, %c0_48] : memref<25x128xf32, #tpu.memory_space<vmem>>, vector<1x128xf32>
      %55 = vector.shape_cast %54 : vector<1x128xf32> to vector<128xf32>
      %56 = vector.shape_cast %55 : vector<128xf32> to vector<1x1x128xf32>
      %57 = vector.broadcast %56 : vector<1x1x128xf32> to vector<4x8x128xf32>
      %58 = arith.mulf %53, %57 : vector<4x8x128xf32>
      %59 = arith.addf %50, %58 : vector<4x8x128xf32>
      %c0_i32_49 = arith.constant 0 : i32
      %60 = arith.addi %31, %c0_i32_49 : i32
      %61 = arith.index_cast %60 : i32 to index
      %c9 = arith.constant 9 : index
      %c0_50 = arith.constant 0 : index
      %62 = vector.load %arg9[%61, %c9, %c0_50] : memref<12x18x128xf32, #tpu.memory_space<vmem>>, vector<4x8x128xf32>
      %c3 = arith.constant 3 : index
      %c0_51 = arith.constant 0 : index
      %63 = vector.load %arg2[%c3, %c0_51] : memref<25x128xf32, #tpu.memory_space<vmem>>, vector<1x128xf32>
      %64 = vector.shape_cast %63 : vector<1x128xf32> to vector<128xf32>
      %65 = vector.shape_cast %64 : vector<128xf32> to vector<1x1x128xf32>
      %66 = vector.broadcast %65 : vector<1x1x128xf32> to vector<4x8x128xf32>
      %67 = arith.mulf %62, %66 : vector<4x8x128xf32>
      %68 = arith.addf %59, %67 : vector<4x8x128xf32>
      %c0_i32_52 = arith.constant 0 : i32
      %69 = arith.addi %31, %c0_i32_52 : i32
      %70 = arith.index_cast %69 : i32 to index
      %c10_53 = arith.constant 10 : index
      %c0_54 = arith.constant 0 : index
      %71 = vector.load %arg9[%70, %c10_53, %c0_54] : memref<12x18x128xf32, #tpu.memory_space<vmem>>, vector<4x8x128xf32>
      %c4 = arith.constant 4 : index
      %c0_55 = arith.constant 0 : index
      %72 = vector.load %arg2[%c4, %c0_55] : memref<25x128xf32, #tpu.memory_space<vmem>>, vector<1x128xf32>
      %73 = vector.shape_cast %72 : vector<1x128xf32> to vector<128xf32>
      %74 = vector.shape_cast %73 : vector<128xf32> to vector<1x1x128xf32>
      %75 = vector.broadcast %74 : vector<1x1x128xf32> to vector<4x8x128xf32>
      %76 = arith.mulf %71, %75 : vector<4x8x128xf32>
      %77 = arith.addf %68, %76 : vector<4x8x128xf32>
      %c1_i32_56 = arith.constant 1 : i32
      %78 = arith.addi %31, %c1_i32_56 : i32
      %79 = arith.index_cast %78 : i32 to index
      %c6_57 = arith.constant 6 : index
      %c0_58 = arith.constant 0 : index
      %80 = vector.load %arg9[%79, %c6_57, %c0_58] : memref<12x18x128xf32, #tpu.memory_space<vmem>>, vector<4x8x128xf32>
      %c5 = arith.constant 5 : index
      %c0_59 = arith.constant 0 : index
      %81 = vector.load %arg2[%c5, %c0_59] : memref<25x128xf32, #tpu.memory_space<vmem>>, vector<1x128xf32>
      %82 = vector.shape_cast %81 : vector<1x128xf32> to vector<128xf32>
      %83 = vector.shape_cast %82 : vector<128xf32> to vector<1x1x128xf32>
      %84 = vector.broadcast %83 : vector<1x1x128xf32> to vector<4x8x128xf32>
      %85 = arith.mulf %80, %84 : vector<4x8x128xf32>
      %86 = arith.addf %77, %85 : vector<4x8x128xf32>
      %c1_i32_60 = arith.constant 1 : i32
      %87 = arith.addi %31, %c1_i32_60 : i32
      %88 = arith.index_cast %87 : i32 to index
      %c7_61 = arith.constant 7 : index
      %c0_62 = arith.constant 0 : index
      %89 = vector.load %arg9[%88, %c7_61, %c0_62] : memref<12x18x128xf32, #tpu.memory_space<vmem>>, vector<4x8x128xf32>
      %c6_63 = arith.constant 6 : index
      %c0_64 = arith.constant 0 : index
      %90 = vector.load %arg2[%c6_63, %c0_64] : memref<25x128xf32, #tpu.memory_space<vmem>>, vector<1x128xf32>
      %91 = vector.shape_cast %90 : vector<1x128xf32> to vector<128xf32>
      %92 = vector.shape_cast %91 : vector<128xf32> to vector<1x1x128xf32>
      %93 = vector.broadcast %92 : vector<1x1x128xf32> to vector<4x8x128xf32>
      %94 = arith.mulf %89, %93 : vector<4x8x128xf32>
      %95 = arith.addf %86, %94 : vector<4x8x128xf32>
      %c1_i32_65 = arith.constant 1 : i32
      %96 = arith.addi %31, %c1_i32_65 : i32
      %97 = arith.index_cast %96 : i32 to index
      %c8_66 = arith.constant 8 : index
      %c0_67 = arith.constant 0 : index
      %98 = vector.load %arg9[%97, %c8_66, %c0_67] : memref<12x18x128xf32, #tpu.memory_space<vmem>>, vector<4x8x128xf32>
      %c7_68 = arith.constant 7 : index
      %c0_69 = arith.constant 0 : index
      %99 = vector.load %arg2[%c7_68, %c0_69] : memref<25x128xf32, #tpu.memory_space<vmem>>, vector<1x128xf32>
      %100 = vector.shape_cast %99 : vector<1x128xf32> to vector<128xf32>
      %101 = vector.shape_cast %100 : vector<128xf32> to vector<1x1x128xf32>
      %102 = vector.broadcast %101 : vector<1x1x128xf32> to vector<4x8x128xf32>
      %103 = arith.mulf %98, %102 : vector<4x8x128xf32>
      %104 = arith.addf %95, %103 : vector<4x8x128xf32>
      %c1_i32_70 = arith.constant 1 : i32
      %105 = arith.addi %31, %c1_i32_70 : i32
      %106 = arith.index_cast %105 : i32 to index
      %c9_71 = arith.constant 9 : index
      %c0_72 = arith.constant 0 : index
      %107 = vector.load %arg9[%106, %c9_71, %c0_72] : memref<12x18x128xf32, #tpu.memory_space<vmem>>, vector<4x8x128xf32>
      %c8_73 = arith.constant 8 : index
      %c0_74 = arith.constant 0 : index
      %108 = vector.load %arg2[%c8_73, %c0_74] : memref<25x128xf32, #tpu.memory_space<vmem>>, vector<1x128xf32>
      %109 = vector.shape_cast %108 : vector<1x128xf32> to vector<128xf32>
      %110 = vector.shape_cast %109 : vector<128xf32> to vector<1x1x128xf32>
      %111 = vector.broadcast %110 : vector<1x1x128xf32> to vector<4x8x128xf32>
      %112 = arith.mulf %107, %111 : vector<4x8x128xf32>
      %113 = arith.addf %104, %112 : vector<4x8x128xf32>
      %c1_i32_75 = arith.constant 1 : i32
      %114 = arith.addi %31, %c1_i32_75 : i32
      %115 = arith.index_cast %114 : i32 to index
      %c10_76 = arith.constant 10 : index
      %c0_77 = arith.constant 0 : index
      %116 = vector.load %arg9[%115, %c10_76, %c0_77] : memref<12x18x128xf32, #tpu.memory_space<vmem>>, vector<4x8x128xf32>
      %c9_78 = arith.constant 9 : index
      %c0_79 = arith.constant 0 : index
      %117 = vector.load %arg2[%c9_78, %c0_79] : memref<25x128xf32, #tpu.memory_space<vmem>>, vector<1x128xf32>
      %118 = vector.shape_cast %117 : vector<1x128xf32> to vector<128xf32>
      %119 = vector.shape_cast %118 : vector<128xf32> to vector<1x1x128xf32>
      %120 = vector.broadcast %119 : vector<1x1x128xf32> to vector<4x8x128xf32>
      %121 = arith.mulf %116, %120 : vector<4x8x128xf32>
      %122 = arith.addf %113, %121 : vector<4x8x128xf32>
      %c2_i32_80 = arith.constant 2 : i32
      %123 = arith.addi %31, %c2_i32_80 : i32
      %124 = arith.index_cast %123 : i32 to index
      %c6_81 = arith.constant 6 : index
      %c0_82 = arith.constant 0 : index
      %125 = vector.load %arg9[%124, %c6_81, %c0_82] : memref<12x18x128xf32, #tpu.memory_space<vmem>>, vector<4x8x128xf32>
      %c10_83 = arith.constant 10 : index
      %c0_84 = arith.constant 0 : index
      %126 = vector.load %arg2[%c10_83, %c0_84] : memref<25x128xf32, #tpu.memory_space<vmem>>, vector<1x128xf32>
      %127 = vector.shape_cast %126 : vector<1x128xf32> to vector<128xf32>
      %128 = vector.shape_cast %127 : vector<128xf32> to vector<1x1x128xf32>
      %129 = vector.broadcast %128 : vector<1x1x128xf32> to vector<4x8x128xf32>
      %130 = arith.mulf %125, %129 : vector<4x8x128xf32>
      %131 = arith.addf %122, %130 : vector<4x8x128xf32>
      %c2_i32_85 = arith.constant 2 : i32
      %132 = arith.addi %31, %c2_i32_85 : i32
      %133 = arith.index_cast %132 : i32 to index
      %c7_86 = arith.constant 7 : index
      %c0_87 = arith.constant 0 : index
      %134 = vector.load %arg9[%133, %c7_86, %c0_87] : memref<12x18x128xf32, #tpu.memory_space<vmem>>, vector<4x8x128xf32>
      %c11 = arith.constant 11 : index
      %c0_88 = arith.constant 0 : index
      %135 = vector.load %arg2[%c11, %c0_88] : memref<25x128xf32, #tpu.memory_space<vmem>>, vector<1x128xf32>
      %136 = vector.shape_cast %135 : vector<1x128xf32> to vector<128xf32>
      %137 = vector.shape_cast %136 : vector<128xf32> to vector<1x1x128xf32>
      %138 = vector.broadcast %137 : vector<1x1x128xf32> to vector<4x8x128xf32>
      %139 = arith.mulf %134, %138 : vector<4x8x128xf32>
      %140 = arith.addf %131, %139 : vector<4x8x128xf32>
      %c2_i32_89 = arith.constant 2 : i32
      %141 = arith.addi %31, %c2_i32_89 : i32
      %142 = arith.index_cast %141 : i32 to index
      %c8_90 = arith.constant 8 : index
      %c0_91 = arith.constant 0 : index
      %143 = vector.load %arg9[%142, %c8_90, %c0_91] : memref<12x18x128xf32, #tpu.memory_space<vmem>>, vector<4x8x128xf32>
      %c12 = arith.constant 12 : index
      %c0_92 = arith.constant 0 : index
      %144 = vector.load %arg2[%c12, %c0_92] : memref<25x128xf32, #tpu.memory_space<vmem>>, vector<1x128xf32>
      %145 = vector.shape_cast %144 : vector<1x128xf32> to vector<128xf32>
      %146 = vector.shape_cast %145 : vector<128xf32> to vector<1x1x128xf32>
      %147 = vector.broadcast %146 : vector<1x1x128xf32> to vector<4x8x128xf32>
      %148 = arith.mulf %143, %147 : vector<4x8x128xf32>
      %149 = arith.addf %140, %148 : vector<4x8x128xf32>
      %c2_i32_93 = arith.constant 2 : i32
      %150 = arith.addi %31, %c2_i32_93 : i32
      %151 = arith.index_cast %150 : i32 to index
      %c9_94 = arith.constant 9 : index
      %c0_95 = arith.constant 0 : index
      %152 = vector.load %arg9[%151, %c9_94, %c0_95] : memref<12x18x128xf32, #tpu.memory_space<vmem>>, vector<4x8x128xf32>
      %c13 = arith.constant 13 : index
      %c0_96 = arith.constant 0 : index
      %153 = vector.load %arg2[%c13, %c0_96] : memref<25x128xf32, #tpu.memory_space<vmem>>, vector<1x128xf32>
      %154 = vector.shape_cast %153 : vector<1x128xf32> to vector<128xf32>
      %155 = vector.shape_cast %154 : vector<128xf32> to vector<1x1x128xf32>
      %156 = vector.broadcast %155 : vector<1x1x128xf32> to vector<4x8x128xf32>
      %157 = arith.mulf %152, %156 : vector<4x8x128xf32>
      %158 = arith.addf %149, %157 : vector<4x8x128xf32>
      %c2_i32_97 = arith.constant 2 : i32
      %159 = arith.addi %31, %c2_i32_97 : i32
      %160 = arith.index_cast %159 : i32 to index
      %c10_98 = arith.constant 10 : index
      %c0_99 = arith.constant 0 : index
      %161 = vector.load %arg9[%160, %c10_98, %c0_99] : memref<12x18x128xf32, #tpu.memory_space<vmem>>, vector<4x8x128xf32>
      %c14 = arith.constant 14 : index
      %c0_100 = arith.constant 0 : index
      %162 = vector.load %arg2[%c14, %c0_100] : memref<25x128xf32, #tpu.memory_space<vmem>>, vector<1x128xf32>
      %163 = vector.shape_cast %162 : vector<1x128xf32> to vector<128xf32>
      %164 = vector.shape_cast %163 : vector<128xf32> to vector<1x1x128xf32>
      %165 = vector.broadcast %164 : vector<1x1x128xf32> to vector<4x8x128xf32>
      %166 = arith.mulf %161, %165 : vector<4x8x128xf32>
      %167 = arith.addf %158, %166 : vector<4x8x128xf32>
      %c3_i32 = arith.constant 3 : i32
      %168 = arith.addi %31, %c3_i32 : i32
      %169 = arith.index_cast %168 : i32 to index
      %c6_101 = arith.constant 6 : index
      %c0_102 = arith.constant 0 : index
      %170 = vector.load %arg9[%169, %c6_101, %c0_102] : memref<12x18x128xf32, #tpu.memory_space<vmem>>, vector<4x8x128xf32>
      %c15 = arith.constant 15 : index
      %c0_103 = arith.constant 0 : index
      %171 = vector.load %arg2[%c15, %c0_103] : memref<25x128xf32, #tpu.memory_space<vmem>>, vector<1x128xf32>
      %172 = vector.shape_cast %171 : vector<1x128xf32> to vector<128xf32>
      %173 = vector.shape_cast %172 : vector<128xf32> to vector<1x1x128xf32>
      %174 = vector.broadcast %173 : vector<1x1x128xf32> to vector<4x8x128xf32>
      %175 = arith.mulf %170, %174 : vector<4x8x128xf32>
      %176 = arith.addf %167, %175 : vector<4x8x128xf32>
      %c3_i32_104 = arith.constant 3 : i32
      %177 = arith.addi %31, %c3_i32_104 : i32
      %178 = arith.index_cast %177 : i32 to index
      %c7_105 = arith.constant 7 : index
      %c0_106 = arith.constant 0 : index
      %179 = vector.load %arg9[%178, %c7_105, %c0_106] : memref<12x18x128xf32, #tpu.memory_space<vmem>>, vector<4x8x128xf32>
      %c16_107 = arith.constant 16 : index
      %c0_108 = arith.constant 0 : index
      %180 = vector.load %arg2[%c16_107, %c0_108] : memref<25x128xf32, #tpu.memory_space<vmem>>, vector<1x128xf32>
      %181 = vector.shape_cast %180 : vector<1x128xf32> to vector<128xf32>
      %182 = vector.shape_cast %181 : vector<128xf32> to vector<1x1x128xf32>
      %183 = vector.broadcast %182 : vector<1x1x128xf32> to vector<4x8x128xf32>
      %184 = arith.mulf %179, %183 : vector<4x8x128xf32>
      %185 = arith.addf %176, %184 : vector<4x8x128xf32>
      %c3_i32_109 = arith.constant 3 : i32
      %186 = arith.addi %31, %c3_i32_109 : i32
      %187 = arith.index_cast %186 : i32 to index
      %c8_110 = arith.constant 8 : index
      %c0_111 = arith.constant 0 : index
      %188 = vector.load %arg9[%187, %c8_110, %c0_111] : memref<12x18x128xf32, #tpu.memory_space<vmem>>, vector<4x8x128xf32>
      %c17 = arith.constant 17 : index
      %c0_112 = arith.constant 0 : index
      %189 = vector.load %arg2[%c17, %c0_112] : memref<25x128xf32, #tpu.memory_space<vmem>>, vector<1x128xf32>
      %190 = vector.shape_cast %189 : vector<1x128xf32> to vector<128xf32>
      %191 = vector.shape_cast %190 : vector<128xf32> to vector<1x1x128xf32>
      %192 = vector.broadcast %191 : vector<1x1x128xf32> to vector<4x8x128xf32>
      %193 = arith.mulf %188, %192 : vector<4x8x128xf32>
      %194 = arith.addf %185, %193 : vector<4x8x128xf32>
      %c3_i32_113 = arith.constant 3 : i32
      %195 = arith.addi %31, %c3_i32_113 : i32
      %196 = arith.index_cast %195 : i32 to index
      %c9_114 = arith.constant 9 : index
      %c0_115 = arith.constant 0 : index
      %197 = vector.load %arg9[%196, %c9_114, %c0_115] : memref<12x18x128xf32, #tpu.memory_space<vmem>>, vector<4x8x128xf32>
      %c18 = arith.constant 18 : index
      %c0_116 = arith.constant 0 : index
      %198 = vector.load %arg2[%c18, %c0_116] : memref<25x128xf32, #tpu.memory_space<vmem>>, vector<1x128xf32>
      %199 = vector.shape_cast %198 : vector<1x128xf32> to vector<128xf32>
      %200 = vector.shape_cast %199 : vector<128xf32> to vector<1x1x128xf32>
      %201 = vector.broadcast %200 : vector<1x1x128xf32> to vector<4x8x128xf32>
      %202 = arith.mulf %197, %201 : vector<4x8x128xf32>
      %203 = arith.addf %194, %202 : vector<4x8x128xf32>
      %c3_i32_117 = arith.constant 3 : i32
      %204 = arith.addi %31, %c3_i32_117 : i32
      %205 = arith.index_cast %204 : i32 to index
      %c10_118 = arith.constant 10 : index
      %c0_119 = arith.constant 0 : index
      %206 = vector.load %arg9[%205, %c10_118, %c0_119] : memref<12x18x128xf32, #tpu.memory_space<vmem>>, vector<4x8x128xf32>
      %c19 = arith.constant 19 : index
      %c0_120 = arith.constant 0 : index
      %207 = vector.load %arg2[%c19, %c0_120] : memref<25x128xf32, #tpu.memory_space<vmem>>, vector<1x128xf32>
      %208 = vector.shape_cast %207 : vector<1x128xf32> to vector<128xf32>
      %209 = vector.shape_cast %208 : vector<128xf32> to vector<1x1x128xf32>
      %210 = vector.broadcast %209 : vector<1x1x128xf32> to vector<4x8x128xf32>
      %211 = arith.mulf %206, %210 : vector<4x8x128xf32>
      %212 = arith.addf %203, %211 : vector<4x8x128xf32>
      %c4_i32_121 = arith.constant 4 : i32
      %213 = arith.addi %31, %c4_i32_121 : i32
      %214 = arith.index_cast %213 : i32 to index
      %c6_122 = arith.constant 6 : index
      %c0_123 = arith.constant 0 : index
      %215 = vector.load %arg9[%214, %c6_122, %c0_123] : memref<12x18x128xf32, #tpu.memory_space<vmem>>, vector<4x8x128xf32>
      %c20 = arith.constant 20 : index
      %c0_124 = arith.constant 0 : index
      %216 = vector.load %arg2[%c20, %c0_124] : memref<25x128xf32, #tpu.memory_space<vmem>>, vector<1x128xf32>
      %217 = vector.shape_cast %216 : vector<1x128xf32> to vector<128xf32>
      %218 = vector.shape_cast %217 : vector<128xf32> to vector<1x1x128xf32>
      %219 = vector.broadcast %218 : vector<1x1x128xf32> to vector<4x8x128xf32>
      %220 = arith.mulf %215, %219 : vector<4x8x128xf32>
      %221 = arith.addf %212, %220 : vector<4x8x128xf32>
      %c4_i32_125 = arith.constant 4 : i32
      %222 = arith.addi %31, %c4_i32_125 : i32
      %223 = arith.index_cast %222 : i32 to index
      %c7_126 = arith.constant 7 : index
      %c0_127 = arith.constant 0 : index
      %224 = vector.load %arg9[%223, %c7_126, %c0_127] : memref<12x18x128xf32, #tpu.memory_space<vmem>>, vector<4x8x128xf32>
      %c21 = arith.constant 21 : index
      %c0_128 = arith.constant 0 : index
      %225 = vector.load %arg2[%c21, %c0_128] : memref<25x128xf32, #tpu.memory_space<vmem>>, vector<1x128xf32>
      %226 = vector.shape_cast %225 : vector<1x128xf32> to vector<128xf32>
      %227 = vector.shape_cast %226 : vector<128xf32> to vector<1x1x128xf32>
      %228 = vector.broadcast %227 : vector<1x1x128xf32> to vector<4x8x128xf32>
      %229 = arith.mulf %224, %228 : vector<4x8x128xf32>
      %230 = arith.addf %221, %229 : vector<4x8x128xf32>
      %c4_i32_129 = arith.constant 4 : i32
      %231 = arith.addi %31, %c4_i32_129 : i32
      %232 = arith.index_cast %231 : i32 to index
      %c8_130 = arith.constant 8 : index
      %c0_131 = arith.constant 0 : index
      %233 = vector.load %arg9[%232, %c8_130, %c0_131] : memref<12x18x128xf32, #tpu.memory_space<vmem>>, vector<4x8x128xf32>
      %c22 = arith.constant 22 : index
      %c0_132 = arith.constant 0 : index
      %234 = vector.load %arg2[%c22, %c0_132] : memref<25x128xf32, #tpu.memory_space<vmem>>, vector<1x128xf32>
      %235 = vector.shape_cast %234 : vector<1x128xf32> to vector<128xf32>
      %236 = vector.shape_cast %235 : vector<128xf32> to vector<1x1x128xf32>
      %237 = vector.broadcast %236 : vector<1x1x128xf32> to vector<4x8x128xf32>
      %238 = arith.mulf %233, %237 : vector<4x8x128xf32>
      %239 = arith.addf %230, %238 : vector<4x8x128xf32>
      %c4_i32_133 = arith.constant 4 : i32
      %240 = arith.addi %31, %c4_i32_133 : i32
      %241 = arith.index_cast %240 : i32 to index
      %c9_134 = arith.constant 9 : index
      %c0_135 = arith.constant 0 : index
      %242 = vector.load %arg9[%241, %c9_134, %c0_135] : memref<12x18x128xf32, #tpu.memory_space<vmem>>, vector<4x8x128xf32>
      %c23 = arith.constant 23 : index
      %c0_136 = arith.constant 0 : index
      %243 = vector.load %arg2[%c23, %c0_136] : memref<25x128xf32, #tpu.memory_space<vmem>>, vector<1x128xf32>
      %244 = vector.shape_cast %243 : vector<1x128xf32> to vector<128xf32>
      %245 = vector.shape_cast %244 : vector<128xf32> to vector<1x1x128xf32>
      %246 = vector.broadcast %245 : vector<1x1x128xf32> to vector<4x8x128xf32>
      %247 = arith.mulf %242, %246 : vector<4x8x128xf32>
      %248 = arith.addf %239, %247 : vector<4x8x128xf32>
      %c4_i32_137 = arith.constant 4 : i32
      %249 = arith.addi %31, %c4_i32_137 : i32
      %250 = arith.index_cast %249 : i32 to index
      %c10_138 = arith.constant 10 : index
      %c0_139 = arith.constant 0 : index
      %251 = vector.load %arg9[%250, %c10_138, %c0_139] : memref<12x18x128xf32, #tpu.memory_space<vmem>>, vector<4x8x128xf32>
      %c24 = arith.constant 24 : index
      %c0_140 = arith.constant 0 : index
      %252 = vector.load %arg2[%c24, %c0_140] : memref<25x128xf32, #tpu.memory_space<vmem>>, vector<1x128xf32>
      %253 = vector.shape_cast %252 : vector<1x128xf32> to vector<128xf32>
      %254 = vector.shape_cast %253 : vector<128xf32> to vector<1x1x128xf32>
      %255 = vector.broadcast %254 : vector<1x1x128xf32> to vector<4x8x128xf32>
      %256 = arith.mulf %251, %255 : vector<4x8x128xf32>
      %257 = arith.addf %248, %256 : vector<4x8x128xf32>
      %258 = vector.shape_cast %11 : vector<128xf32> to vector<1x1x128xf32>
      %259 = vector.broadcast %258 : vector<1x1x128xf32> to vector<4x8x128xf32>
      %260 = arith.mulf %257, %259 : vector<4x8x128xf32>
      %261 = vector.shape_cast %13 : vector<128xf32> to vector<1x1x128xf32>
      %262 = vector.broadcast %261 : vector<1x1x128xf32> to vector<4x8x128xf32>
      %263 = arith.addf %260, %262 : vector<4x8x128xf32>
      %cst_141 = arith.constant 0.000000e+00 : f32
      %264 = vector.broadcast %cst_141 : f32 to vector<4x8x128xf32>
      %265 = arith.maximumf %263, %264 : vector<4x8x128xf32>
      %c2_i32_142 = arith.constant 2 : i32
      %266 = arith.addi %31, %c2_i32_142 : i32
      %267 = arith.index_cast %266 : i32 to index
      %c8_143 = arith.constant 8 : index
      %c0_144 = arith.constant 0 : index
      %268 = vector.load %arg9[%267, %c8_143, %c0_144] : memref<12x18x128xf32, #tpu.memory_space<vmem>>, vector<4x8x128xf32>
      %269 = arith.addf %268, %265 : vector<4x8x128xf32>
      %270 = arith.index_cast %31 : i32 to index
      %c0_145 = arith.constant 0 : index
      %c0_146 = arith.constant 0 : index
      %271 = vector.load %arg10[%270, %c0_145, %c0_146] : memref<8x8x128xf32, #tpu.memory_space<vmem>>, vector<4x8x128xf32>
      tpu.vector_store %arg10[%270, %c0_145, %c0_146], %269 {strides = array<i32>} : memref<8x8x128xf32, #tpu.memory_space<vmem>>, vector<4x8x128xf32>,
    }
    %c2_i32_20 = arith.constant 2 : i32
    %c0_21 = arith.constant 0 : index
    %c0_22 = arith.constant 0 : index
    %c0_23 = arith.constant 0 : index
    %15 = vector.load %arg10[%c0_21, %c0_22, %c0_23] : memref<8x8x128xf32, #tpu.memory_space<vmem>>, vector<8x8x128xf32>
    %16 = vector.shape_cast %15 : vector<8x8x128xf32> to vector<64x128xf32>
    %c0_24 = arith.constant 0 : index
    %c0_25 = arith.constant 0 : index
    %17 = vector.load %arg5[%c0_24, %c0_25] : memref<128x128xf32, #tpu.memory_space<vmem>>, vector<128x128xf32>
    %cst_26 = arith.constant dense<0.000000e+00> : vector<64x128xf32>
    %18 = tpu.matmul %16, %17, %cst_26 {dimension_numbers = #tpu.dot_dimension_numbers<[1], [0], [0], [1], [0, 0, 1, 1], [], []>} : vector<64x128xf32>, vector<128x128xf32>, vector<64x128xf32> -> vector<64x128xf32>
    %c0_27 = arith.constant 0 : index
    %c0_28 = arith.constant 0 : index
    %19 = vector.load %arg6[%c0_27, %c0_28] : memref<1x128xf32, #tpu.memory_space<vmem>>, vector<1x128xf32>
    %20 = vector.broadcast %19 : vector<1x128xf32> to vector<64x128xf32>
    %21 = arith.mulf %18, %20 : vector<64x128xf32>
    %c0_29 = arith.constant 0 : index
    %c0_30 = arith.constant 0 : index
    %22 = vector.load %arg7[%c0_29, %c0_30] : memref<1x128xf32, #tpu.memory_space<vmem>>, vector<1x128xf32>
    %23 = vector.broadcast %22 : vector<1x128xf32> to vector<64x128xf32>
    %24 = arith.addf %21, %23 : vector<64x128xf32>
    %cst_31 = arith.constant 0.000000e+00 : f32
    %25 = vector.broadcast %cst_31 : f32 to vector<64x128xf32>
    %26 = arith.maximumf %24, %25 : vector<64x128xf32>
    %27 = vector.shape_cast %26 : vector<64x128xf32> to vector<8x8x128xf32>
    %c0_32 = arith.constant 0 : index
    %c0_33 = arith.constant 0 : index
    %c0_34 = arith.constant 0 : index
    %c0_35 = arith.constant 0 : index
    %28 = vector.load %arg8[%c0_32, %c0_33, %c0_34, %c0_35] : memref<1x8x8x128xf32, #tpu.memory_space<vmem>>, vector<1x8x8x128xf32>
    %29 = vector.shape_cast %28 : vector<1x8x8x128xf32> to vector<8x8x128xf32>
    %30 = vector.shape_cast %27 : vector<8x8x128xf32> to vector<1x8x8x128xf32>
    tpu.vector_store %arg8[%c0_32, %c0_33, %c0_34, %c0_35], %30 {strides = array<i32>} : memref<1x8x8x128xf32, #tpu.memory_space<vmem>>, vector<1x8x8x128xf32>,
    return
  }
  func.func @transform_0(%arg0: i32) -> (i32, i32, i32, i32) {
    %c0_i32 = arith.constant 0 : i32
    %c0_i32_0 = arith.constant 0 : i32
    %c0_i32_1 = arith.constant 0 : i32
    %c0_i32_2 = arith.constant 0 : i32
    return %arg0, %c0_i32, %c0_i32_0, %c0_i32_1 : i32, i32, i32, i32
  }
  func.func @transform_1(%arg0: i32) -> (i32, i32) {
    %c0_i32 = arith.constant 0 : i32
    %c0_i32_0 = arith.constant 0 : i32
    %c0_i32_1 = arith.constant 0 : i32
    return %c0_i32, %c0_i32_0 : i32, i32
  }
  func.func @transform_2(%arg0: i32) -> (i32, i32) {
    %c0_i32 = arith.constant 0 : i32
    %c0_i32_0 = arith.constant 0 : i32
    %c0_i32_1 = arith.constant 0 : i32
    return %c0_i32, %c0_i32_0 : i32, i32
  }
  func.func @transform_3(%arg0: i32) -> (i32, i32) {
    %c0_i32 = arith.constant 0 : i32
    %c0_i32_0 = arith.constant 0 : i32
    %c0_i32_1 = arith.constant 0 : i32
    return %c0_i32, %c0_i32_0 : i32, i32
  }
  func.func @transform_4(%arg0: i32) -> (i32, i32) {
    %c0_i32 = arith.constant 0 : i32
    %c0_i32_0 = arith.constant 0 : i32
    %c0_i32_1 = arith.constant 0 : i32
    return %c0_i32, %c0_i32_0 : i32, i32
  }
  func.func @transform_5(%arg0: i32) -> (i32, i32) {
    %c0_i32 = arith.constant 0 : i32
    %c0_i32_0 = arith.constant 0 : i32
    %c0_i32_1 = arith.constant 0 : i32
    return %c0_i32, %c0_i32_0 : i32, i32
  }
  func.func @transform_6(%arg0: i32) -> (i32, i32) {
    %c0_i32 = arith.constant 0 : i32
    %c0_i32_0 = arith.constant 0 : i32
    %c0_i32_1 = arith.constant 0 : i32
    return %c0_i32, %c0_i32_0 : i32, i32
  }
  func.func @transform_7(%arg0: i32) -> (i32, i32, i32, i32) {
    %c0_i32 = arith.constant 0 : i32
    %c0_i32_0 = arith.constant 0 : i32
    %c0_i32_1 = arith.constant 0 : i32
    %c0_i32_2 = arith.constant 0 : i32
    return %arg0, %c0_i32, %c0_i32_0, %c0_i32_1 : i32, i32, i32, i32
  }
}

module attributes {stable_mosaic.version = 11 : i64} {
  func.func @kernel(%arg0: i32, %arg1: memref<8x64x128xf32, #tpu.memory_space<vmem>>, %arg2: memref<128x128xf32, #tpu.memory_space<vmem>>, %arg3: memref<1x128xf32, #tpu.memory_space<vmem>>, %arg4: memref<8x128xf32, #tpu.memory_space<vmem>>, %arg5: memref<8x128xf32, #tpu.memory_space<vmem>>) attributes {dimension_semantics = [#tpu.dimension_semantics<arbitrary>], iteration_bounds = array<i64: 1>, scalar_prefetch = 0 : i64, scratch_operands = 1 : i64, tpu.core_type = #tpu.core_type<tc>, window_params = [{transform_indices = @transform_0, window_bounds = array<i64: 8, 64, 128>}, {pipeline_mode = #tpu.pipeline_mode<synchronous>, transform_indices = @transform_1, window_bounds = array<i64: 128, 128>}, {pipeline_mode = #tpu.pipeline_mode<synchronous>, transform_indices = @transform_2, window_bounds = array<i64: 1, 128>}, {pipeline_mode = #tpu.pipeline_mode<synchronous>, transform_indices = @transform_3, window_bounds = array<i64: 8, 128>}]} {
    %c0_i32 = arith.constant 0 : i32
    %0 = arith.cmpi eq, %arg0, %c0_i32 : i32
    %1 = arith.extui %0 : i1 to i32
    %c0_i32_0 = arith.constant 0 : i32
    %2 = arith.cmpi ne, %1, %c0_i32_0 : i32
    scf.if %2 {
      %cst_9 = arith.constant 0xFF800000 : f32
      %11 = vector.broadcast %cst_9 : f32 to vector<8x128xf32>
      %c0_10 = arith.constant 0 : index
      %c0_11 = arith.constant 0 : index
      %12 = vector.load %arg5[%c0_10, %c0_11] : memref<8x128xf32, #tpu.memory_space<vmem>>, vector<8x128xf32>
      tpu.vector_store %arg5[%c0_10, %c0_11], %11 {strides = array<i32>} : memref<8x128xf32, #tpu.memory_space<vmem>>, vector<8x128xf32>,
    } else {
    }
    %c0 = arith.constant 0 : index
    %c0_1 = arith.constant 0 : index
    %3 = vector.load %arg5[%c0, %c0_1] : memref<8x128xf32, #tpu.memory_space<vmem>>, vector<8x128xf32>
    %c0_2 = arith.constant 0 : index
    %c0_3 = arith.constant 0 : index
    %c0_4 = arith.constant 0 : index
    %4 = vector.load %arg1[%c0_2, %c0_3, %c0_4] : memref<8x64x128xf32, #tpu.memory_space<vmem>>, vector<8x64x128xf32>
    %cst = arith.constant dense<0xFF800000> : vector<8x128xf32>
    %5 = vector.multi_reduction <maximumf>, %4, %cst [1] : vector<8x64x128xf32> to vector<8x128xf32>
    %6 = arith.maximumf %3, %5 : vector<8x128xf32>
    %c0_5 = arith.constant 0 : index
    %c0_6 = arith.constant 0 : index
    %7 = vector.load %arg5[%c0_5, %c0_6] : memref<8x128xf32, #tpu.memory_space<vmem>>, vector<8x128xf32>
    tpu.vector_store %arg5[%c0_5, %c0_6], %6 {strides = array<i32>} : memref<8x128xf32, #tpu.memory_space<vmem>>, vector<8x128xf32>,
    %c0_i32_7 = arith.constant 0 : i32
    %8 = arith.cmpi eq, %arg0, %c0_i32_7 : i32
    %9 = arith.extui %8 : i1 to i32
    %c0_i32_8 = arith.constant 0 : i32
    %10 = arith.cmpi ne, %9, %c0_i32_8 : i32
    scf.if %10 {
      %c0_9 = arith.constant 0 : index
      %c0_10 = arith.constant 0 : index
      %11 = vector.load %arg5[%c0_9, %c0_10] : memref<8x128xf32, #tpu.memory_space<vmem>>, vector<8x128xf32>
      %c0_11 = arith.constant 0 : index
      %c0_12 = arith.constant 0 : index
      %12 = vector.load %arg2[%c0_11, %c0_12] : memref<128x128xf32, #tpu.memory_space<vmem>>, vector<128x128xf32>
      %cst_13 = arith.constant dense<0.000000e+00> : vector<8x128xf32>
      %13 = tpu.matmul %11, %12, %cst_13 {dimension_numbers = #tpu.dot_dimension_numbers<[1], [0], [0], [1], [0, 0, 1, 1], [], []>} : vector<8x128xf32>, vector<128x128xf32>, vector<8x128xf32> -> vector<8x128xf32>
      %c0_14 = arith.constant 0 : index
      %c0_15 = arith.constant 0 : index
      %14 = vector.load %arg3[%c0_14, %c0_15] : memref<1x128xf32, #tpu.memory_space<vmem>>, vector<1x128xf32>
      %15 = vector.broadcast %14 : vector<1x128xf32> to vector<8x128xf32>
      %16 = arith.addf %13, %15 : vector<8x128xf32>
      %c0_16 = arith.constant 0 : index
      %c0_17 = arith.constant 0 : index
      %17 = vector.load %arg4[%c0_16, %c0_17] : memref<8x128xf32, #tpu.memory_space<vmem>>, vector<8x128xf32>
      tpu.vector_store %arg4[%c0_16, %c0_17], %16 {strides = array<i32>} : memref<8x128xf32, #tpu.memory_space<vmem>>, vector<8x128xf32>,
    } else {
    }
    return
  }
  func.func @transform_0(%arg0: i32) -> (i32, i32, i32) {
    %c0_i32 = arith.constant 0 : i32
    %c0_i32_0 = arith.constant 0 : i32
    %c0_i32_1 = arith.constant 0 : i32
    return %c0_i32, %arg0, %c0_i32_0 : i32, i32, i32
  }
  func.func @transform_1(%arg0: i32) -> (i32, i32) {
    %c0_i32 = arith.constant 0 : i32
    %c0_i32_0 = arith.constant 0 : i32
    %c0_i32_1 = arith.constant 0 : i32
    return %c0_i32, %c0_i32_0 : i32, i32
  }
  func.func @transform_2(%arg0: i32) -> (i32, i32) {
    %c0_i32 = arith.constant 0 : i32
    %c0_i32_0 = arith.constant 0 : i32
    %c0_i32_1 = arith.constant 0 : i32
    return %c0_i32, %c0_i32_0 : i32, i32
  }
  func.func @transform_3(%arg0: i32) -> (i32, i32) {
    %c0_i32 = arith.constant 0 : i32
    %c0_i32_0 = arith.constant 0 : i32
    %c0_i32_1 = arith.constant 0 : i32
    return %c0_i32, %c0_i32_0 : i32, i32
  }
}

</mosaic_0001>

<llo_original>
// kernel: _lambda_.4
$region0: #{_lambda_.4}
  #allocation0 [shape = 'u32[]', space=smem, size = 0x4, offset = 0x4, fixed_abs, tag = 'smem constant byte address 0x4 - core index']
  #allocation1 [shape = 'u32[72,128]{1,0:T(1,128)}', space=vmem, size = 0x9000, scoped, tag = 'internal scratch']
  #allocation2 [shape = 'f32[128,128]{1,0:T(8,128)}', space=vmem, size = 0x10000, scoped, tag = 'scratch operand']
  %s0 = inlined_call_operand.vmem [shape: f32[128,256], index: 0, kind: input, shape index: {}]
  %s1 = inlined_call_operand.vmem [shape: f32[256,128], index: 1, kind: input, shape index: {}]
  %s2 = inlined_call_operand.vmem [shape: f32[1,128], index: 2, kind: input, shape index: {}]
  %s3 = inlined_call_operand.vmem [shape: f32[1,128], index: 3, kind: input, shape index: {}]
  %s4 = inlined_call_operand.vmem [shape: f32[128,128], index: 4, kind: output, shape index: {}]
  %s5 = sld [smem:[#allocation0]]
  $region34: #{_lambda_.4} parent=0
    _
  %s7 = ssub.s32 1, %s5
  %s8 = scalar_select 0, %s7, %s5
  // Predicated region
  $region2: #{_lambda_.4} parent=0 // pred_check
    _
  $region3: #{_lambda_.4} parent=0 // pred_check_branch
    %10 = sbr.rel (0) target = $region5
  $region4: #{_lambda_.4} parent=0 // pred_region
    _
  $region5: #{_lambda_.4} parent=0 // pred_fallthru
    _
  // Predicated region
  $region6: #{_lambda_.4} parent=0 // pred_check
    _
  $region7: #{_lambda_.4} parent=0 // pred_check_branch
    %12 = sbr.rel (0) target = $region9
  $region8: #{_lambda_.4} parent=0 // pred_region
    _
  $region9: #{_lambda_.4} parent=0 // pred_fallthru
    _
  // Predicated region
  $region10: #{_lambda_.4} parent=0 // pred_check
    _
  $region11: #{_lambda_.4} parent=0 // pred_check_branch
    %14 = sbr.rel (0) target = $region13
  $region12: #{_lambda_.4} parent=0 // pred_region
    _
  $region13: #{_lambda_.4} parent=0 // pred_fallthru
    _
  // Predicated region
  $region14: #{_lambda_.4} parent=0 // pred_check
    _
  $region15: #{_lambda_.4} parent=0 // pred_check_branch
    %16 = sbr.rel (0) target = $region17
  $region16: #{_lambda_.4} parent=0 // pred_region
    _
  $region17: #{_lambda_.4} parent=0 // pred_fallthru
    _
  %p17 = scmp.eq.s32.totalorder 0, 0
  // Predicated region
  $region18: #{_lambda_.4} parent=0 // pred_check
    %p18 = pneg %p17
  $region19: #{_lambda_.4} parent=0 // pred_check_branch
    %20 = sbr.rel (%p18) target = $region21
  $region20: #{_lambda_.4} parent=0 // pred_region
    %21 = vst [vmem:[#allocation2] sm:$0xff] 0.0
    %22 = vst [vmem:[#allocation2 + $0x8] sm:$0xff] 0.0
    %23 = vst [vmem:[#allocation2 + $0x10] sm:$0xff] 0.0
    %24 = vst [vmem:[#allocation2 + $0x18] sm:$0xff] 0.0
    %25 = vst [vmem:[#allocation2 + $0x20] sm:$0xff] 0.0
    %26 = vst [vmem:[#allocation2 + $0x28] sm:$0xff] 0.0
    %27 = vst [vmem:[#allocation2 + $0x30] sm:$0xff] 0.0
    %28 = vst [vmem:[#allocation2 + $0x38] sm:$0xff] 0.0
    %29 = vst [vmem:[#allocation2 + $0x40] sm:$0xff] 0.0
    %30 = vst [vmem:[#allocation2 + $0x48] sm:$0xff] 0.0
    %31 = vst [vmem:[#allocation2 + $0x50] sm:$0xff] 0.0
    %32 = vst [vmem:[#allocation2 + $0x58] sm:$0xff] 0.0
    %33 = vst [vmem:[#allocation2 + $0x60] sm:$0xff] 0.0
    %34 = vst [vmem:[#allocation2 + $0x68] sm:$0xff] 0.0
    %35 = vst [vmem:[#allocation2 + $0x70] sm:$0xff] 0.0
    %36 = vst [vmem:[#allocation2 + $0x78] sm:$0xff] 0.0
  $region21: #{_lambda_.4} parent=0 // pred_fallthru
    _
  %v37 = vld [vmem:[#allocation2] sm:$0xff]
  %v38 = vld [vmem:[#allocation2 + $0x8] sm:$0xff]
  %v39 = vld [vmem:[#allocation2 + $0x10] sm:$0xff]
  %v40 = vld [vmem:[#allocation2 + $0x18] sm:$0xff]
  %v41 = vld [vmem:[#allocation2 + $0x20] sm:$0xff]
  %v42 = vld [vmem:[#allocation2 + $0x28] sm:$0xff]
  %v43 = vld [vmem:[#allocation2 + $0x30] sm:$0xff]
  %v44 = vld [vmem:[#allocation2 + $0x38] sm:$0xff]
  %v45 = vld [vmem:[#allocation2 + $0x40] sm:$0xff]
  %v46 = vld [vmem:[#allocation2 + $0x48] sm:$0xff]
  %v47 = vld [vmem:[#allocation2 + $0x50] sm:$0xff]
  %v48 = vld [vmem:[#allocation2 + $0x58] sm:$0xff]
  %v49 = vld [vmem:[#allocation2 + $0x60] sm:$0xff]
  %v50 = vld [vmem:[#allocation2 + $0x68] sm:$0xff]
  %v51 = vld [vmem:[#allocation2 + $0x70] sm:$0xff]
  %v52 = vld [vmem:[#allocation2 + $0x78] sm:$0xff]
  %v53 = vld [vmem:[%s0] sm:$0xff]
  %v54 = vld [vmem:[%s0 + $0x8] sm:$0xff]
  %v55 = vld [vmem:[%s0 + $0x10] sm:$0xff]
  %v56 = vld [vmem:[%s0 + $0x18] sm:$0xff]
  %v57 = vld [vmem:[%s0 + $0x20] sm:$0xff]
  %v58 = vld [vmem:[%s0 + $0x28] sm:$0xff]
  %v59 = vld [vmem:[%s0 + $0x30] sm:$0xff]
  %v60 = vld [vmem:[%s0 + $0x38] sm:$0xff]
  %v61 = vld [vmem:[%s0 + $0x40] sm:$0xff]
  %v62 = vld [vmem:[%s0 + $0x48] sm:$0xff]
  %v63 = vld [vmem:[%s0 + $0x50] sm:$0xff]
  %v64 = vld [vmem:[%s0 + $0x58] sm:$0xff]
  %v65 = vld [vmem:[%s0 + $0x60] sm:$0xff]
  %v66 = vld [vmem:[%s0 + $0x68] sm:$0xff]
  %v67 = vld [vmem:[%s0 + $0x70] sm:$0xff]
  %v68 = vld [vmem:[%s0 + $0x78] sm:$0xff]
  %v69 = vld [vmem:[%s0 + $0x80] sm:$0xff]
  %v70 = vld [vmem:[%s0 + $0x88] sm:$0xff]
  %v71 = vld [vmem:[%s0 + $0x90] sm:$0xff]
  %v72 = vld [vmem:[%s0 + $0x98] sm:$0xff]
  %v73 = vld [vmem:[%s0 + $0xa0] sm:$0xff]
  %v74 = vld [vmem:[%s0 + $0xa8] sm:$0xff]
  %v75 = vld [vmem:[%s0 + $0xb0] sm:$0xff]
  %v76 = vld [vmem:[%s0 + $0xb8] sm:$0xff]
  %v77 = vld [vmem:[%s0 + $0xc0] sm:$0xff]
  %v78 = vld [vmem:[%s0 + $0xc8] sm:$0xff]
  %v79 = vld [vmem:[%s0 + $0xd0] sm:$0xff]
  %v80 = vld [vmem:[%s0 + $0xd8] sm:$0xff]
  %v81 = vld [vmem:[%s0 + $0xe0] sm:$0xff]
  %v82 = vld [vmem:[%s0 + $0xe8] sm:$0xff]
  %v83 = vld [vmem:[%s0 + $0xf0] sm:$0xff]
  %v84 = vld [vmem:[%s0 + $0xf8] sm:$0xff]
  %v85 = vld [vmem:[%s1] sm:$0xff]
  %v86 = vld [vmem:[%s1 + $0x8] sm:$0xff]
  %v87 = vld [vmem:[%s1 + $0x10] sm:$0xff]
  %v88 = vld [vmem:[%s1 + $0x18] sm:$0xff]
  %v89 = vld [vmem:[%s1 + $0x20] sm:$0xff]
  %v90 = vld [vmem:[%s1 + $0x28] sm:$0xff]
  %v91 = vld [vmem:[%s1 + $0x30] sm:$0xff]
  %v92 = vld [vmem:[%s1 + $0x38] sm:$0xff]
  %v93 = vld [vmem:[%s1 + $0x40] sm:$0xff]
  %v94 = vld [vmem:[%s1 + $0x48] sm:$0xff]
  %v95 = vld [vmem:[%s1 + $0x50] sm:$0xff]
  %v96 = vld [vmem:[%s1 + $0x58] sm:$0xff]
  %v97 = vld [vmem:[%s1 + $0x60] sm:$0xff]
  %v98 = vld [vmem:[%s1 + $0x68] sm:$0xff]
  %v99 = vld [vmem:[%s1 + $0x70] sm:$0xff]
  %v100 = vld [vmem:[%s1 + $0x78] sm:$0xff]
  %v101 = vld [vmem:[%s1 + $0x80] sm:$0xff]
  %v102 = vld [vmem:[%s1 + $0x88] sm:$0xff]
  %v103 = vld [vmem:[%s1 + $0x90] sm:$0xff]
  %v104 = vld [vmem:[%s1 + $0x98] sm:$0xff]
  %v105 = vld [vmem:[%s1 + $0xa0] sm:$0xff]
  %v106 = vld [vmem:[%s1 + $0xa8] sm:$0xff]
  %v107 = vld [vmem:[%s1 + $0xb0] sm:$0xff]
  %v108 = vld [vmem:[%s1 + $0xb8] sm:$0xff]
  %v109 = vld [vmem:[%s1 + $0xc0] sm:$0xff]
  %v110 = vld [vmem:[%s1 + $0xc8] sm:$0xff]
  %v111 = vld [vmem:[%s1 + $0xd0] sm:$0xff]
  %v112 = vld [vmem:[%s1 + $0xd8] sm:$0xff]
  %v113 = vld [vmem:[%s1 + $0xe0] sm:$0xff]
  %v114 = vld [vmem:[%s1 + $0xe8] sm:$0xff]
  %v115 = vld [vmem:[%s1 + $0xf0] sm:$0xff]
  %v116 = vld [vmem:[%s1 + $0xf8] sm:$0xff]
  %117 = vmatpush.msra.mxu0 %v100
  %118 = vmatpush.msra.mxu0 %v99
  %119 = vmatpush.msra.mxu0 %v98
  %120 = vmatpush.msra.mxu0 %v97
  %121 = vmatpush.msra.mxu0 %v96
  %122 = vmatpush.msra.mxu0 %v95
  %123 = vmatpush.msra.mxu0 %v94
  %124 = vmatpush.msra.mxu0 %v93
  %125 = vmatpush.msra.mxu0 %v92
  %126 = vmatpush.msra.mxu0 %v91
  %127 = vmatpush.msra.mxu0 %v90
  %128 = vmatpush.msra.mxu0 %v89
  %129 = vmatpush.msra.mxu0 %v88
  %130 = vmatpush.msra.mxu0 %v87
  %131 = vmatpush.msra.mxu0 %v86
  %132 = vmatpush.msra.mxu0 %v85
  %133 = vmatmul.f32.gmra.mxu0 %v53
  %v134 = vpop.f32.mrf.mxu0
  %v135 = vadd.f32 0.0, %v134
  %136 = vmatmul.f32.gmra.mxu0 %v55
  %v137 = vpop.f32.mrf.mxu0
  %v138 = vadd.f32 0.0, %v137
  %139 = vmatmul.f32.gmra.mxu0 %v57
  %v140 = vpop.f32.mrf.mxu0
  %v141 = vadd.f32 0.0, %v140
  %142 = vmatmul.f32.gmra.mxu0 %v59
  %v143 = vpop.f32.mrf.mxu0
  %v144 = vadd.f32 0.0, %v143
  %145 = vmatmul.f32.gmra.mxu0 %v61
  %v146 = vpop.f32.mrf.mxu0
  %v147 = vadd.f32 0.0, %v146
  %148 = vmatmul.f32.gmra.mxu0 %v63
  %v149 = vpop.f32.mrf.mxu0
  %v150 = vadd.f32 0.0, %v149
  %151 = vmatmul.f32.gmra.mxu0 %v65
  %v152 = vpop.f32.mrf.mxu0
  %v153 = vadd.f32 0.0, %v152
  %154 = vmatmul.f32.gmra.mxu0 %v67
  %v155 = vpop.f32.mrf.mxu0
  %v156 = vadd.f32 0.0, %v155
  %157 = vmatmul.f32.gmra.mxu0 %v69
  %v158 = vpop.f32.mrf.mxu0
  %v159 = vadd.f32 0.0, %v158
  %160 = vmatmul.f32.gmra.mxu0 %v71
  %v161 = vpop.f32.mrf.mxu0
  %v162 = vadd.f32 0.0, %v161
  %163 = vmatmul.f32.gmra.mxu0 %v73
  %v164 = vpop.f32.mrf.mxu0
  %v165 = vadd.f32 0.0, %v164
  %166 = vmatmul.f32.gmra.mxu0 %v75
  %v167 = vpop.f32.mrf.mxu0
  %v168 = vadd.f32 0.0, %v167
  %169 = vmatmul.f32.gmra.mxu0 %v77
  %v170 = vpop.f32.mrf.mxu0
  %v171 = vadd.f32 0.0, %v170
  %172 = vmatmul.f32.gmra.mxu0 %v79
  %v173 = vpop.f32.mrf.mxu0
  %v174 = vadd.f32 0.0, %v173
  %175 = vmatmul.f32.gmra.mxu0 %v81
  %v176 = vpop.f32.mrf.mxu0
  %v177 = vadd.f32 0.0, %v176
  %178 = vmatmul.f32.gmra.mxu0 %v83
  %v179 = vpop.f32.mrf.mxu0
  %v180 = vadd.f32 0.0, %v179
  %181 = vdwg.mxu0
  %182 = vmatpush.msra.mxu0 %v116
  %183 = vmatpush.msra.mxu0 %v115
  %184 = vmatpush.msra.mxu0 %v114
  %185 = vmatpush.msra.mxu0 %v113
  %186 = vmatpush.msra.mxu0 %v112
  %187 = vmatpush.msra.mxu0 %v111
  %188 = vmatpush.msra.mxu0 %v110
  %189 = vmatpush.msra.mxu0 %v109
  %190 = vmatpush.msra.mxu0 %v108
  %191 = vmatpush.msra.mxu0 %v107
  %192 = vmatpush.msra.mxu0 %v106
  %193 = vmatpush.msra.mxu0 %v105
  %194 = vmatpush.msra.mxu0 %v104
  %195 = vmatpush.msra.mxu0 %v103
  %196 = vmatpush.msra.mxu0 %v102
  %197 = vmatpush.msra.mxu0 %v101
  %198 = vmatmul.f32.gmra.mxu0 %v54
  %v199 = vpop.f32.mrf.mxu0
  %v200 = vadd.f32 %v135, %v199
  %201 = vmatmul.f32.gmra.mxu0 %v56
  %v202 = vpop.f32.mrf.mxu0
  %v203 = vadd.f32 %v138, %v202
  %204 = vmatmul.f32.gmra.mxu0 %v58
  %v205 = vpop.f32.mrf.mxu0
  %v206 = vadd.f32 %v141, %v205
  %207 = vmatmul.f32.gmra.mxu0 %v60
  %v208 = vpop.f32.mrf.mxu0
  %v209 = vadd.f32 %v144, %v208
  %210 = vmatmul.f32.gmra.mxu0 %v62
  %v211 = vpop.f32.mrf.mxu0
  %v212 = vadd.f32 %v147, %v211
  %213 = vmatmul.f32.gmra.mxu0 %v64
  %v214 = vpop.f32.mrf.mxu0
  %v215 = vadd.f32 %v150, %v214
  %216 = vmatmul.f32.gmra.mxu0 %v66
  %v217 = vpop.f32.mrf.mxu0
  %v218 = vadd.f32 %v153, %v217
  %219 = vmatmul.f32.gmra.mxu0 %v68
  %v220 = vpop.f32.mrf.mxu0
  %v221 = vadd.f32 %v156, %v220
  %222 = vmatmul.f32.gmra.mxu0 %v70
  %v223 = vpop.f32.mrf.mxu0
  %v224 = vadd.f32 %v159, %v223
  %225 = vmatmul.f32.gmra.mxu0 %v72
  %v226 = vpop.f32.mrf.mxu0
  %v227 = vadd.f32 %v162, %v226
  %228 = vmatmul.f32.gmra.mxu0 %v74
  %v229 = vpop.f32.mrf.mxu0
  %v230 = vadd.f32 %v165, %v229
  %231 = vmatmul.f32.gmra.mxu0 %v76
  %v232 = vpop.f32.mrf.mxu0
  %v233 = vadd.f32 %v168, %v232
  %234 = vmatmul.f32.gmra.mxu0 %v78
  %v235 = vpop.f32.mrf.mxu0
  %v236 = vadd.f32 %v171, %v235
  %237 = vmatmul.f32.gmra.mxu0 %v80
  %v238 = vpop.f32.mrf.mxu0
  %v239 = vadd.f32 %v174, %v238
  %240 = vmatmul.f32.gmra.mxu0 %v82
  %v241 = vpop.f32.mrf.mxu0
  %v242 = vadd.f32 %v177, %v241
  %243 = vmatmul.f32.gmra.mxu0 %v84
  %v244 = vpop.f32.mrf.mxu0
  %v245 = vadd.f32 %v180, %v244
  %246 = vdwg.mxu0
  %v247 = vadd.f32 %v37, %v200
  %v248 = vadd.f32 %v38, %v203
  %v249 = vadd.f32 %v39, %v206
  %v250 = vadd.f32 %v40, %v209
  %v251 = vadd.f32 %v41, %v212
  %v252 = vadd.f32 %v42, %v215
  %v253 = vadd.f32 %v43, %v218
  %v254 = vadd.f32 %v44, %v221
  %v255 = vadd.f32 %v45, %v224
  %v256 = vadd.f32 %v46, %v227
  %v257 = vadd.f32 %v47, %v230
  %v258 = vadd.f32 %v48, %v233
  %v259 = vadd.f32 %v49, %v236
  %v260 = vadd.f32 %v50, %v239
  %v261 = vadd.f32 %v51, %v242
  %v262 = vadd.f32 %v52, %v245
  %263 = vst [vmem:[#allocation2] sm:$0xff] %v247
  %264 = vst [vmem:[#allocation2 + $0x8] sm:$0xff] %v248
  %265 = vst [vmem:[#allocation2 + $0x10] sm:$0xff] %v249
  %266 = vst [vmem:[#allocation2 + $0x18] sm:$0xff] %v250
  %267 = vst [vmem:[#allocation2 + $0x20] sm:$0xff] %v251
  %268 = vst [vmem:[#allocation2 + $0x28] sm:$0xff] %v252
  %269 = vst [vmem:[#allocation2 + $0x30] sm:$0xff] %v253
  %270 = vst [vmem:[#allocation2 + $0x38] sm:$0xff] %v254
  %271 = vst [vmem:[#allocation2 + $0x40] sm:$0xff] %v255
  %272 = vst [vmem:[#allocation2 + $0x48] sm:$0xff] %v256
  %273 = vst [vmem:[#allocation2 + $0x50] sm:$0xff] %v257
  %274 = vst [vmem:[#allocation2 + $0x58] sm:$0xff] %v258
  %275 = vst [vmem:[#allocation2 + $0x60] sm:$0xff] %v259
  %276 = vst [vmem:[#allocation2 + $0x68] sm:$0xff] %v260
  %277 = vst [vmem:[#allocation2 + $0x70] sm:$0xff] %v261
  %278 = vst [vmem:[#allocation2 + $0x78] sm:$0xff] %v262
  // Predicated region
  $region22: #{_lambda_.4} parent=0 // pred_check
    %p279 = pneg %p17
  $region23: #{_lambda_.4} parent=0 // pred_check_branch
    %281 = sbr.rel (%p279) target = $region25
  $region24: #{_lambda_.4} parent=0 // pred_region
    %v282 = vld [vmem:[#allocation2] sm:$0xff]
    %v283 = vld [vmem:[#allocation2 + $0x8] sm:$0xff]
    %v284 = vld [vmem:[#allocation2 + $0x10] sm:$0xff]
    %v285 = vld [vmem:[#allocation2 + $0x18] sm:$0xff]
    %v286 = vld [vmem:[#allocation2 + $0x20] sm:$0xff]
    %v287 = vld [vmem:[#allocation2 + $0x28] sm:$0xff]
    %v288 = vld [vmem:[#allocation2 + $0x30] sm:$0xff]
    %v289 = vld [vmem:[#allocation2 + $0x38] sm:$0xff]
    %v290 = vld [vmem:[#allocation2 + $0x40] sm:$0xff]
    %v291 = vld [vmem:[#allocation2 + $0x48] sm:$0xff]
    %v292 = vld [vmem:[#allocation2 + $0x50] sm:$0xff]
    %v293 = vld [vmem:[#allocation2 + $0x58] sm:$0xff]
    %v294 = vld [vmem:[#allocation2 + $0x60] sm:$0xff]
    %v295 = vld [vmem:[#allocation2 + $0x68] sm:$0xff]
    %v296 = vld [vmem:[#allocation2 + $0x70] sm:$0xff]
    %v297 = vld [vmem:[#allocation2 + $0x78] sm:$0xff]
    %v298 = vld [vmem:[%s2] sm:$0x1]
    %v300 = vperm.slane %v298, 0
    %v302 = vmul.f32 %v282, %v300
    %v303 = vmul.f32 %v283, %v300
    %v304 = vmul.f32 %v284, %v300
    %v305 = vmul.f32 %v285, %v300
    %v306 = vmul.f32 %v286, %v300
    %v307 = vmul.f32 %v287, %v300
    %v308 = vmul.f32 %v288, %v300
    %v309 = vmul.f32 %v289, %v300
    %v310 = vmul.f32 %v290, %v300
    %v311 = vmul.f32 %v291, %v300
    %v312 = vmul.f32 %v292, %v300
    %v313 = vmul.f32 %v293, %v300
    %v314 = vmul.f32 %v294, %v300
    %v315 = vmul.f32 %v295, %v300
    %v316 = vmul.f32 %v296, %v300
    %v317 = vmul.f32 %v297, %v300
    %v318 = vld [vmem:[%s3] sm:$0x1]
    %v320 = vperm.slane %v318, 0
    %v322 = vadd.f32 %v302, %v320
    %v323 = vadd.f32 %v303, %v320
    %v324 = vadd.f32 %v304, %v320
    %v325 = vadd.f32 %v305, %v320
    %v326 = vadd.f32 %v306, %v320
    %v327 = vadd.f32 %v307, %v320
    %v328 = vadd.f32 %v308, %v320
    %v329 = vadd.f32 %v309, %v320
    %v330 = vadd.f32 %v310, %v320
    %v331 = vadd.f32 %v311, %v320
    %v332 = vadd.f32 %v312, %v320
    %v333 = vadd.f32 %v313, %v320
    %v334 = vadd.f32 %v314, %v320
    %v335 = vadd.f32 %v315, %v320
    %v336 = vadd.f32 %v316, %v320
    %v337 = vadd.f32 %v317, %v320
    %v338 = vmax.f32 %v322, 0.0
    %v339 = vmax.f32 %v323, 0.0
    %v340 = vmax.f32 %v324, 0.0
    %v341 = vmax.f32 %v325, 0.0
    %v342 = vmax.f32 %v326, 0.0
    %v343 = vmax.f32 %v327, 0.0
    %v344 = vmax.f32 %v328, 0.0
    %v345 = vmax.f32 %v329, 0.0
    %v346 = vmax.f32 %v330, 0.0
    %v347 = vmax.f32 %v331, 0.0
    %v348 = vmax.f32 %v332, 0.0
    %v349 = vmax.f32 %v333, 0.0
    %v350 = vmax.f32 %v334, 0.0
    %v351 = vmax.f32 %v335, 0.0
    %v352 = vmax.f32 %v336, 0.0
    %v353 = vmax.f32 %v337, 0.0
    %354 = vst [vmem:[%s4] sm:$0xff] %v338
    %355 = vst [vmem:[%s4 + $0x8] sm:$0xff] %v339
    %356 = vst [vmem:[%s4 + $0x10] sm:$0xff] %v340
    %357 = vst [vmem:[%s4 + $0x18] sm:$0xff] %v341
    %358 = vst [vmem:[%s4 + $0x20] sm:$0xff] %v342
    %359 = vst [vmem:[%s4 + $0x28] sm:$0xff] %v343
    %360 = vst [vmem:[%s4 + $0x30] sm:$0xff] %v344
    %361 = vst [vmem:[%s4 + $0x38] sm:$0xff] %v345
    %362 = vst [vmem:[%s4 + $0x40] sm:$0xff] %v346
    %363 = vst [vmem:[%s4 + $0x48] sm:$0xff] %v347
    %364 = vst [vmem:[%s4 + $0x50] sm:$0xff] %v348
    %365 = vst [vmem:[%s4 + $0x58] sm:$0xff] %v349
    %366 = vst [vmem:[%s4 + $0x60] sm:$0xff] %v350
    %367 = vst [vmem:[%s4 + $0x68] sm:$0xff] %v351
    %368 = vst [vmem:[%s4 + $0x70] sm:$0xff] %v352
    %369 = vst [vmem:[%s4 + $0x78] sm:$0xff] %v353
  $region25: #{_lambda_.4} parent=0 // pred_fallthru
    _
  // Predicated region
  $region26: #{_lambda_.4} parent=0 // pred_check
    _
  $region27: #{_lambda_.4} parent=0 // pred_check_branch
    %371 = sbr.rel (0) target = $region29
  $region28: #{_lambda_.4} parent=0 // pred_region
    _
  $region29: #{_lambda_.4} parent=0 // pred_fallthru
    _
  // Predicated region
  $region30: #{_lambda_.4} parent=0 // pred_check
    _
  $region31: #{_lambda_.4} parent=0 // pred_check_branch
    %373 = sbr.rel (0) target = $region33
  $region32: #{_lambda_.4} parent=0 // pred_region
    _
  $region33: #{_lambda_.4} parent=0 // pred_fallthru
    _

// kernel: _lambda_.5
$region0: #{_lambda_.5}
  #allocation0 [shape = 'u32[]', space=smem, size = 0x4, offset = 0x4, fixed_abs, tag = 'smem constant byte address 0x4 - core index']
  #allocation1 [shape = 'u32[72,128]{1,0:T(1,128)}', space=vmem, size = 0x9000, scoped, tag = 'internal scratch']
  #allocation2 [shape = 'f32[12,18,128]{2,1,0:T(8,128)}', space=vmem, size = 0x24000, scoped, tag = 'scratch operand']
  #allocation3 [shape = 'f32[8,8,128]{2,1,0:T(8,128)}', space=vmem, size = 0x8000, scoped, tag = 'scratch operand']
  %s0 = inlined_call_operand.vmem [shape: f32[2,8,8,128], index: 0, kind: input, shape index: {}]
  %s1 = inlined_call_operand.vmem [shape: f32[25,128], index: 1, kind: input, shape index: {}]
  %s2 = inlined_call_operand.vmem [shape: f32[1,128], index: 2, kind: input, shape index: {}]
  %s3 = inlined_call_operand.vmem [shape: f32[1,128], index: 3, kind: input, shape index: {}]
  %s4 = inlined_call_operand.vmem [shape: f32[128,128], index: 4, kind: input, shape index: {}]
  %s5 = inlined_call_operand.vmem [shape: f32[1,128], index: 5, kind: input, shape index: {}]
  %s6 = inlined_call_operand.vmem [shape: f32[1,128], index: 6, kind: input, shape index: {}]
  %s7 = inlined_call_operand.vmem [shape: f32[2,8,8,128], index: 7, kind: output, shape index: {}]
  %s8 = sld [smem:[#allocation0]]
  $region68: #{_lambda_.5} parent=0
    _
  %s10 = ssub.s32 1, %s8
  %s11 = scalar_select 0, %s10, %s8
  loop: start=0, step=1, limit=4
  $region2: #{_lambda_.5} parent=0 // loop_pre_header
    _
  $region3: #{_lambda_.5} parent=0 // loop_header
    %s13 = sphi 0, %s17
    %p14 = scmp.ge.s32.totalorder %s13, 4
    %s23 = sphi 0, %s25
    %s26 = sphi 0, %s23
    %s27 = sphi 0, %s26
    %s43 = sphi 0, %s27
    %s47 = sphi 0, %s47
    %s49 = sphi 0, %s47
    %s50 = sphi 0, %s49
    %s64 = sphi 0, %s50
    %s68 = sphi 0, %s68
    %s70 = sphi 0, %s68
    %s71 = sphi 0, %s70
    %s85 = sphi 0, %s71
    %s89 = sphi 0, %s89
    %s91 = sphi 0, %s89
    %s92 = sphi 0, %s91
    %s106 = sphi 0, %s92
    %s110 = sphi 0, %s110
    %s112 = sphi 0, %s110
    %s113 = sphi 0, %s112
    %s127 = sphi 0, %s113
    %s131 = sphi 0, %s131
    %s133 = sphi 0, %s131
    %s134 = sphi 0, %s133
    %s148 = sphi 0, %s134
    %s152 = sphi 0, %s152
    %s154 = sphi 0, %s152
    %s155 = sphi 0, %s154
    %s169 = sphi 0, %s155
    %s175 = sphi 0, %s177
    %s178 = sphi 0, %s175
    %s179 = sphi 0, %s178
    %s195 = sphi 0, %s179
  $region4: #{_lambda_.5} parent=0 // loop_header_branch
    %16 = sbr.rel (%p14) target = $region8
  $region5: #{_lambda_.5} parent=0 // loop_body
    %s18 = ssub.s32 %s13, 1
    %s19 = ssub.s32 %s13, 2
    %s20 = sadd.s32 %s13, 1
    %s21 = ssub.s32 %s13, %s20
    %p22 = scmp.eq.s32.totalorder %s21, 0
    %s24 = sadd.s32 %s23, 1
    %s25 = scalar_select %p22, %s23, %s24
    %p28 = pneg %p22
    %p29 = scmp.eq.s32.totalorder %s13, 1
    %p30 = por %p28, %p29
    %p31 = scmp.ne.s32.totalorder %s23, %s26
    %p32 = scmp.eq.s32.totalorder %s13, 0
    %p33 = por %p31, %p32
    %p34 = scmp.ne.s32.totalorder %s23, %s26
    %p35 = scmp.eq.s32.totalorder %s18, 1
    %p36 = por %p34, %p35
    %p37 = scmp.ne.s32.totalorder %s26, %s27
    %p38 = scmp.eq.s32.totalorder %s18, 0
    %p39 = por %p37, %p38
    %p40 = scmp.ne.s32.totalorder %s26, %s27
    %p41 = scmp.eq.s32.totalorder %s19, 1
    %p42 = por %p40, %p41
    %p44 = scmp.ne.s32.totalorder %s27, %s43
    %p45 = scmp.eq.s32.totalorder %s19, 0
    %p46 = por %p44, %p45
    %s48 = sadd.s32 %s47, 1
    %p51 = scmp.eq.s32.totalorder %s13, 1
    %p52 = scmp.ne.s32.totalorder %s47, %s49
    %p53 = scmp.eq.s32.totalorder %s13, 0
    %p54 = por %p52, %p53
    %p55 = scmp.ne.s32.totalorder %s47, %s49
    %p56 = scmp.eq.s32.totalorder %s18, 1
    %p57 = por %p55, %p56
    %p58 = scmp.ne.s32.totalorder %s49, %s50
    %p59 = scmp.eq.s32.totalorder %s18, 0
    %p60 = por %p58, %p59
    %p61 = scmp.ne.s32.totalorder %s49, %s50
    %p62 = scmp.eq.s32.totalorder %s19, 1
    %p63 = por %p61, %p62
    %p65 = scmp.ne.s32.totalorder %s50, %s64
    %p66 = scmp.eq.s32.totalorder %s19, 0
    %p67 = por %p65, %p66
    %s69 = sadd.s32 %s68, 1
    %p72 = scmp.eq.s32.totalorder %s13, 1
    %p73 = scmp.ne.s32.totalorder %s68, %s70
    %p74 = scmp.eq.s32.totalorder %s13, 0
    %p75 = por %p73, %p74
    %p76 = scmp.ne.s32.totalorder %s68, %s70
    %p77 = scmp.eq.s32.totalorder %s18, 1
    %p78 = por %p76, %p77
    %p79 = scmp.ne.s32.totalorder %s70, %s71
    %p80 = scmp.eq.s32.totalorder %s18, 0
    %p81 = por %p79, %p80
    %p82 = scmp.ne.s32.totalorder %s70, %s71
    %p83 = scmp.eq.s32.totalorder %s19, 1
    %p84 = por %p82, %p83
    %p86 = scmp.ne.s32.totalorder %s71, %s85
    %p87 = scmp.eq.s32.totalorder %s19, 0
    %p88 = por %p86, %p87
    %s90 = sadd.s32 %s89, 1
    %p93 = scmp.eq.s32.totalorder %s13, 1
    %p94 = scmp.ne.s32.totalorder %s89, %s91
    %p95 = scmp.eq.s32.totalorder %s13, 0
    %p96 = por %p94, %p95
    %p97 = scmp.ne.s32.totalorder %s89, %s91
    %p98 = scmp.eq.s32.totalorder %s18, 1
    %p99 = por %p97, %p98
    %p100 = scmp.ne.s32.totalorder %s91, %s92
    %p101 = scmp.eq.s32.totalorder %s18, 0
    %p102 = por %p100, %p101
    %p103 = scmp.ne.s32.totalorder %s91, %s92
    %p104 = scmp.eq.s32.totalorder %s19, 1
    %p105 = por %p103, %p104
    %p107 = scmp.ne.s32.totalorder %s92, %s106
    %p108 = scmp.eq.s32.totalorder %s19, 0
    %p109 = por %p107, %p108
    %s111 = sadd.s32 %s110, 1
    %p114 = scmp.eq.s32.totalorder %s13, 1
    %p115 = scmp.ne.s32.totalorder %s110, %s112
    %p116 = scmp.eq.s32.totalorder %s13, 0
    %p117 = por %p115, %p116
    %p118 = scmp.ne.s32.totalorder %s110, %s112
    %p119 = scmp.eq.s32.totalorder %s18, 1
    %p120 = por %p118, %p119
    %p121 = scmp.ne.s32.totalorder %s112, %s113
    %p122 = scmp.eq.s32.totalorder %s18, 0
    %p123 = por %p121, %p122
    %p124 = scmp.ne.s32.totalorder %s112, %s113
    %p125 = scmp.eq.s32.totalorder %s19, 1
    %p126 = por %p124, %p125
    %p128 = scmp.ne.s32.totalorder %s113, %s127
    %p129 = scmp.eq.s32.totalorder %s19, 0
    %p130 = por %p128, %p129
    %s132 = sadd.s32 %s131, 1
    %p135 = scmp.eq.s32.totalorder %s13, 1
    %p136 = scmp.ne.s32.totalorder %s131, %s133
    %p137 = scmp.eq.s32.totalorder %s13, 0
    %p138 = por %p136, %p137
    %p139 = scmp.ne.s32.totalorder %s131, %s133
    %p140 = scmp.eq.s32.totalorder %s18, 1
    %p141 = por %p139, %p140
    %p142 = scmp.ne.s32.totalorder %s133, %s134
    %p143 = scmp.eq.s32.totalorder %s18, 0
    %p144 = por %p142, %p143
    %p145 = scmp.ne.s32.totalorder %s133, %s134
    %p146 = scmp.eq.s32.totalorder %s19, 1
    %p147 = por %p145, %p146
    %p149 = scmp.ne.s32.totalorder %s134, %s148
    %p150 = scmp.eq.s32.totalorder %s19, 0
    %p151 = por %p149, %p150
    %s153 = sadd.s32 %s152, 1
    %p156 = scmp.eq.s32.totalorder %s13, 1
    %p157 = scmp.ne.s32.totalorder %s152, %s154
    %p158 = scmp.eq.s32.totalorder %s13, 0
    %p159 = por %p157, %p158
    %p160 = scmp.ne.s32.totalorder %s152, %s154
    %p161 = scmp.eq.s32.totalorder %s18, 1
    %p162 = por %p160, %p161
    %p163 = scmp.ne.s32.totalorder %s154, %s155
    %p164 = scmp.eq.s32.totalorder %s18, 0
    %p165 = por %p163, %p164
    %p166 = scmp.ne.s32.totalorder %s154, %s155
    %p167 = scmp.eq.s32.totalorder %s19, 1
    %p168 = por %p166, %p167
    %p170 = scmp.ne.s32.totalorder %s155, %s169
    %p171 = scmp.eq.s32.totalorder %s19, 0
    %p172 = por %p170, %p171
    %s173 = ssub.s32 %s13, %s20
    %p174 = scmp.eq.s32.totalorder %s173, 0
    %s176 = sadd.s32 %s175, 1
    %s177 = scalar_select %p174, %s175, %s176
    %p180 = pneg %p174
    %p181 = scmp.eq.s32.totalorder %s13, 1
    %p182 = por %p180, %p181
    %p183 = scmp.ne.s32.totalorder %s175, %s178
    %p184 = scmp.eq.s32.totalorder %s13, 0
    %p185 = por %p183, %p184
    %p186 = scmp.ne.s32.totalorder %s175, %s178
    %p187 = scmp.eq.s32.totalorder %s18, 1
    %p188 = por %p186, %p187
    %p189 = scmp.ne.s32.totalorder %s178, %s179
    %p190 = scmp.eq.s32.totalorder %s18, 0
    %p191 = por %p189, %p190
    %p192 = scmp.ne.s32.totalorder %s178, %s179
    %p193 = scmp.eq.s32.totalorder %s19, 1
    %p194 = por %p192, %p193
    %p196 = scmp.ne.s32.totalorder %s179, %s195
    %p197 = scmp.eq.s32.totalorder %s19, 0
    %p198 = por %p196, %p197
    %p199 = scmp.le.s32.totalorder 1, %s13
    %p200 = scmp.lt.s32.totalorder %s13, 3
    %p201 = pnand %p199, %p200
    %p202 = pneg %p201
    // Predicated region
    $region9: #{_lambda_.5} parent=5 // pred_check
      _
    $region10: #{_lambda_.5} parent=5 // pred_check_branch
      %204 = sbr.rel (%p201) target = $region12
    $region11: #{_lambda_.5} parent=5 // pred_region
      %s205 = ssub.s32 %s13, 1
      // Predicated region
      $region13: #{_lambda_.5} parent=11 // pred_check
        %p206 = pneg %p60
      $region14: #{_lambda_.5} parent=11 // pred_check_branch
        %208 = sbr.rel (%p206) target = $region16
      $region15: #{_lambda_.5} parent=11 // pred_region
        _
      $region16: #{_lambda_.5} parent=11 // pred_fallthru
        _
      // Predicated region
      $region17: #{_lambda_.5} parent=11 // pred_check
        %p209 = pneg %p81
      $region18: #{_lambda_.5} parent=11 // pred_check_branch
        %211 = sbr.rel (%p209) target = $region20
      $region19: #{_lambda_.5} parent=11 // pred_region
        _
      $region20: #{_lambda_.5} parent=11 // pred_fallthru
        _
      // Predicated region
      $region21: #{_lambda_.5} parent=11 // pred_check
        %p212 = pneg %p102
      $region22: #{_lambda_.5} parent=11 // pred_check_branch
        %214 = sbr.rel (%p212) target = $region24
      $region23: #{_lambda_.5} parent=11 // pred_region
        _
      $region24: #{_lambda_.5} parent=11 // pred_fallthru
        _
      // Predicated region
      $region25: #{_lambda_.5} parent=11 // pred_check
        %p215 = pneg %p123
      $region26: #{_lambda_.5} parent=11 // pred_check_branch
        %217 = sbr.rel (%p215) target = $region28
      $region27: #{_lambda_.5} parent=11 // pred_region
        _
      $region28: #{_lambda_.5} parent=11 // pred_fallthru
        _
      // Predicated region
      $region29: #{_lambda_.5} parent=11 // pred_check
        %p218 = pneg %p144
      $region30: #{_lambda_.5} parent=11 // pred_check_branch
        %220 = sbr.rel (%p218) target = $region32
      $region31: #{_lambda_.5} parent=11 // pred_region
        _
      $region32: #{_lambda_.5} parent=11 // pred_fallthru
        _
      // Predicated region
      $region33: #{_lambda_.5} parent=11 // pred_check
        %p221 = pneg %p165
      $region34: #{_lambda_.5} parent=11 // pred_check_branch
        %223 = sbr.rel (%p221) target = $region36
      $region35: #{_lambda_.5} parent=11 // pred_region
        _
      $region36: #{_lambda_.5} parent=11 // pred_fallthru
        _
    $region12: #{_lambda_.5} parent=5 // pred_fallthru
      _
    %p224 = scmp.lt.s32.totalorder %s13, 2
    // Predicated region
    $region37: #{_lambda_.5} parent=5 // pred_check
      %p225 = pneg %p224
    $region38: #{_lambda_.5} parent=5 // pred_check_branch
      %227 = sbr.rel (%p225) target = $region40
    $region39: #{_lambda_.5} parent=5 // pred_region
      // Predicated region
      $region41: #{_lambda_.5} parent=39 // pred_check
        %p228 = pneg %p33
      $region42: #{_lambda_.5} parent=39 // pred_check_branch
        %230 = sbr.rel (%p228) target = $region44
      $region43: #{_lambda_.5} parent=39 // pred_region
        %p231 = scmp.lt.s32.totalorder %s13, 1
        %s232 = scalar_select %p231, %s13, 1
        %s233 = smul.addr %s232, 8
        %s234 = smul.addr %s233, 8
        %s235 = scalar_lea.vmem %s0, %s234
      $region44: #{_lambda_.5} parent=39 // pred_fallthru
        _
    $region40: #{_lambda_.5} parent=5 // pred_fallthru
      _
    %p236 = scmp.le.s32.totalorder 1, %s13
    %p237 = scmp.lt.s32.totalorder %s13, 3
    %p238 = pnand %p236, %p237
    %p239 = pneg %p238
    // Predicated region
    $region45: #{_lambda_.5} parent=5 // pred_check
      _
    $region46: #{_lambda_.5} parent=5 // pred_check_branch
      %241 = sbr.rel (%p238) target = $region48
    $region47: #{_lambda_.5} parent=5 // pred_region
      %s242 = ssub.s32 %s13, 1
      %p243 = scmp.lt.s32.totalorder %s18, 1
      %s244 = scalar_select %p243, %s18, 1
      %s245 = smul.addr %s244, 8
      %s246 = smul.addr %s245, 8
      %s247 = scalar_lea.vmem %s0, %s246
      %p248 = pneg %p39
      %p249 = pneg %p36
      %p250 = pneg %p60
      %p251 = pneg %p57
      %p252 = pneg %p81
      %p253 = pneg %p78
      %p254 = pneg %p102
      %p255 = pneg %p99
      %p256 = pneg %p123
      %p257 = pneg %p120
      %p258 = pneg %p144
      %p259 = pneg %p141
      %p260 = pneg %p165
      %p261 = pneg %p162
      %p262 = pneg %p191
      %p263 = pneg %p188
      %p264 = scmp.lt.s32.totalorder %s18, 1
      %s265 = scalar_select %p264, %s18, 1
      %s266 = smul.addr %s265, 8
      %s267 = smul.addr %s266, 8
      %s268 = scalar_lea.vmem %s7, %s267
      %p269 = scmp.lt.s32.totalorder %s18, 1
      %s270 = scalar_select %p269, %s18, 1
      %s271 = smul.addr %s270, 8
      %s272 = smul.addr %s271, 8
      %s273 = scalar_lea.vmem %s0, %s272
      %p274 = scmp.lt.s32.totalorder %s18, 1
      %s275 = scalar_select %p274, %s18, 1
      %s276 = smul.addr %s275, 8
      %s277 = smul.addr %s276, 8
      %s278 = scalar_lea.vmem %s7, %s277
      %279 = vst [vmem:[#allocation2] sm:$0xff] 0.0
      %280 = vst [vmem:[#allocation2 + $0x8] sm:$0xff] 0.0
      %281 = vst [vmem:[#allocation2 + $0x10] sm:$0x3] 0.0
      %282 = vst [vmem:[#allocation2 + $0x18] sm:$0xff] 0.0
      %283 = vst [vmem:[#allocation2 + $0x20] sm:$0xff] 0.0
      %284 = vst [vmem:[#allocation2 + $0x28] sm:$0x3] 0.0
      %s285 = scalar_lea.vmem [#allocation2], 240
      %286 = vst [vmem:[%s285] sm:$0xff] 0.0
      %287 = vst [vmem:[%s285 + $0x8] sm:$0xff] 0.0
      %288 = vst [vmem:[%s285 + $0x10] sm:$0x3] 0.0
      %289 = vst [vmem:[%s285 + $0x18] sm:$0xff] 0.0
      %290 = vst [vmem:[%s285 + $0x20] sm:$0xff] 0.0
      %291 = vst [vmem:[%s285 + $0x28] sm:$0x3] 0.0
      %292 = vst [vmem:[#allocation2] sm:$0xff] 0.0
      %293 = vst [vmem:[#allocation2 + $0x18] sm:$0xff] 0.0
      %294 = vst [vmem:[#allocation2 + $0x30] sm:$0xff] 0.0
      %295 = vst [vmem:[#allocation2 + $0x48] sm:$0xff] 0.0
      %296 = vst [vmem:[#allocation2 + $0x60] sm:$0xff] 0.0
      %297 = vst [vmem:[#allocation2 + $0x78] sm:$0xff] 0.0
      %298 = vst [vmem:[#allocation2 + $0x90] sm:$0xff] 0.0
      %299 = vst [vmem:[#allocation2 + $0xa8] sm:$0xff] 0.0
      %300 = vst [vmem:[#allocation2 + $0xc0] sm:$0xff] 0.0
      %301 = vst [vmem:[#allocation2 + $0xd8] sm:$0xff] 0.0
      %302 = vst [vmem:[#allocation2 + $0xf0] sm:$0xff] 0.0
      %303 = vst [vmem:[#allocation2 + $0x108] sm:$0xff] 0.0
      %304 = vst [vmem:[#allocation2 + $0x10] sm:$0x3] 0.0
      %305 = vst [vmem:[#allocation2 + $0x28] sm:$0x3] 0.0
      %306 = vst [vmem:[#allocation2 + $0x40] sm:$0x3] 0.0
      %307 = vst [vmem:[#allocation2 + $0x58] sm:$0x3] 0.0
      %308 = vst [vmem:[#allocation2 + $0x70] sm:$0x3] 0.0
      %309 = vst [vmem:[#allocation2 + $0x88] sm:$0x3] 0.0
      %310 = vst [vmem:[#allocation2 + $0xa0] sm:$0x3] 0.0
      %311 = vst [vmem:[#allocation2 + $0xb8] sm:$0x3] 0.0
      %312 = vst [vmem:[#allocation2 + $0xd0] sm:$0x3] 0.0
      %313 = vst [vmem:[#allocation2 + $0xe8] sm:$0x3] 0.0
      %314 = vst [vmem:[#allocation2 + $0x100] sm:$0x3] 0.0
      %315 = vst [vmem:[#allocation2 + $0x118] sm:$0x3] 0.0
      %v316 = vld [vmem:[%s273] sm:$0xff]
      %v317 = vld [vmem:[%s273 + $0x8] sm:$0xff]
      %v318 = vld [vmem:[%s273 + $0x10] sm:$0xff]
      %v319 = vld [vmem:[%s273 + $0x18] sm:$0xff]
      %v320 = vld [vmem:[%s273 + $0x20] sm:$0xff]
      %v321 = vld [vmem:[%s273 + $0x28] sm:$0xff]
      %v322 = vld [vmem:[%s273 + $0x30] sm:$0xff]
      %v323 = vld [vmem:[%s273 + $0x38] sm:$0xff]
      %s324 = scalar_lea.vmem [#allocation2], 48
      %325 = vst [vmem:[%s324 + $0x8] sm:$0xff] %v316
      %326 = vst [vmem:[%s324 + $0x20] sm:$0xff] %v317
      %327 = vst [vmem:[%s324 + $0x38] sm:$0xff] %v318
      %328 = vst [vmem:[%s324 + $0x50] sm:$0xff] %v319
      %329 = vst [vmem:[%s324 + $0x68] sm:$0xff] %v320
      %330 = vst [vmem:[%s324 + $0x80] sm:$0xff] %v321
      %331 = vst [vmem:[%s324 + $0x98] sm:$0xff] %v322
      %332 = vst [vmem:[%s324 + $0xb0] sm:$0xff] %v323
      %v333 = vld [vmem:[%s2] sm:$0x1]
      %v334 = vld [vmem:[%s3] sm:$0x1]
      loop: start=0, step=1, limit=2
      $region49: #{_lambda_.5} parent=47 // loop_pre_header
        _
      $region50: #{_lambda_.5} parent=47 // loop_header
        %s336 = sphi 0, %s340
        %p337 = scmp.ge.s32.totalorder %s336, 2
      $region51: #{_lambda_.5} parent=47 // loop_header_branch
        %339 = sbr.rel (%p337) target = $region55
      $region52: #{_lambda_.5} parent=47 // loop_body
        %s341 = smul.u32 %s336, 4
        %s342 = smul.u32 %s341, 24
        %s343 = scalar_lea.vmem [#allocation2], %s342
        %v344 = vld [vmem:[%s343 + $0x6] sm:$0xff]
        %v345 = vld [vmem:[%s343 + $0x1e] sm:$0xff]
        %v346 = vld [vmem:[%s343 + $0x36] sm:$0xff]
        %v347 = vld [vmem:[%s343 + $0x4e] sm:$0xff]
        %v348 = vld [vmem:[%s1] sm:$0x1]
        %v349 = vperm.slane %v348, 0
        %v350 = vmul.f32 %v344, %v349
        %v351 = vmul.f32 %v345, %v349
        %v352 = vmul.f32 %v346, %v349
        %v353 = vmul.f32 %v347, %v349
        %v354 = vadd.f32 %v350, 0.0
        %v355 = vadd.f32 %v351, 0.0
        %v356 = vadd.f32 %v352, 0.0
        %v357 = vadd.f32 %v353, 0.0
        %v358 = vld [vmem:[%s343 + $0x7] sm:$0xff]
        %v359 = vld [vmem:[%s343 + $0x1f] sm:$0xff]
        %v360 = vld [vmem:[%s343 + $0x37] sm:$0xff]
        %v361 = vld [vmem:[%s343 + $0x4f] sm:$0xff]
        %v362 = vld [vmem:[%s1 + $0x1] sm:$0x1]
        %v363 = vperm.slane %v362, 0
        %v364 = vmul.f32 %v358, %v363
        %v365 = vmul.f32 %v359, %v363
        %v366 = vmul.f32 %v360, %v363
        %v367 = vmul.f32 %v361, %v363
        %v368 = vadd.f32 %v354, %v364
        %v369 = vadd.f32 %v355, %v365
        %v370 = vadd.f32 %v356, %v366
        %v371 = vadd.f32 %v357, %v367
        %v372 = vld [vmem:[%s343 + $0x8] sm:$0xff]
        %v373 = vld [vmem:[%s343 + $0x20] sm:$0xff]
        %v374 = vld [vmem:[%s343 + $0x38] sm:$0xff]
        %v375 = vld [vmem:[%s343 + $0x50] sm:$0xff]
        %v376 = vld [vmem:[%s1 + $0x2] sm:$0x1]
        %v377 = vperm.slane %v376, 0
        %v378 = vmul.f32 %v372, %v377
        %v379 = vmul.f32 %v373, %v377
        %v380 = vmul.f32 %v374, %v377
        %v381 = vmul.f32 %v375, %v377
        %v382 = vadd.f32 %v368, %v378
        %v383 = vadd.f32 %v369, %v379
        %v384 = vadd.f32 %v370, %v380
        %v385 = vadd.f32 %v371, %v381
        %v386 = vld [vmem:[%s343 + $0x9] sm:$0xff]
        %v387 = vld [vmem:[%s343 + $0x21] sm:$0xff]
        %v388 = vld [vmem:[%s343 + $0x39] sm:$0xff]
        %v389 = vld [vmem:[%s343 + $0x51] sm:$0xff]
        %v390 = vld [vmem:[%s1 + $0x3] sm:$0x1]
        %v391 = vperm.slane %v390, 0
        %v392 = vmul.f32 %v386, %v391
        %v393 = vmul.f32 %v387, %v391
        %v394 = vmul.f32 %v388, %v391
        %v395 = vmul.f32 %v389, %v391
        %v396 = vadd.f32 %v382, %v392
        %v397 = vadd.f32 %v383, %v393
        %v398 = vadd.f32 %v384, %v394
        %v399 = vadd.f32 %v385, %v395
        %v400 = vld [vmem:[%s343 + $0xa] sm:$0xff]
        %v401 = vld [vmem:[%s343 + $0x22] sm:$0xff]
        %v402 = vld [vmem:[%s343 + $0x3a] sm:$0xff]
        %v403 = vld [vmem:[%s343 + $0x52] sm:$0xff]
        %v404 = vld [vmem:[%s1 + $0x4] sm:$0x1]
        %v405 = vperm.slane %v404, 0
        %v406 = vmul.f32 %v400, %v405
        %v407 = vmul.f32 %v401, %v405
        %v408 = vmul.f32 %v402, %v405
        %v409 = vmul.f32 %v403, %v405
        %v410 = vadd.f32 %v396, %v406
        %v411 = vadd.f32 %v397, %v407
        %v412 = vadd.f32 %v398, %v408
        %v413 = vadd.f32 %v399, %v409
        %s414 = sadd.s32 %s341, 1
        %s415 = smul.u32 %s414, 24
        %s416 = scalar_lea.vmem [#allocation2], %s415
        %v417 = vld [vmem:[%s416 + $0x6] sm:$0xff]
        %v418 = vld [vmem:[%s416 + $0x1e] sm:$0xff]
        %v419 = vld [vmem:[%s416 + $0x36] sm:$0xff]
        %v420 = vld [vmem:[%s416 + $0x4e] sm:$0xff]
        %v421 = vld [vmem:[%s1 + $0x5] sm:$0x1]
        %v422 = vperm.slane %v421, 0
        %v423 = vmul.f32 %v417, %v422
        %v424 = vmul.f32 %v418, %v422
        %v425 = vmul.f32 %v419, %v422
        %v426 = vmul.f32 %v420, %v422
        %v427 = vadd.f32 %v410, %v423
        %v428 = vadd.f32 %v411, %v424
        %v429 = vadd.f32 %v412, %v425
        %v430 = vadd.f32 %v413, %v426
        %v431 = vld [vmem:[%s416 + $0x7] sm:$0xff]
        %v432 = vld [vmem:[%s416 + $0x1f] sm:$0xff]
        %v433 = vld [vmem:[%s416 + $0x37] sm:$0xff]
        %v434 = vld [vmem:[%s416 + $0x4f] sm:$0xff]
        %v435 = vld [vmem:[%s1 + $0x6] sm:$0x1]
        %v436 = vperm.slane %v435, 0
        %v437 = vmul.f32 %v431, %v436
        %v438 = vmul.f32 %v432, %v436
        %v439 = vmul.f32 %v433, %v436
        %v440 = vmul.f32 %v434, %v436
        %v441 = vadd.f32 %v427, %v437
        %v442 = vadd.f32 %v428, %v438
        %v443 = vadd.f32 %v429, %v439
        %v444 = vadd.f32 %v430, %v440
        %v445 = vld [vmem:[%s416 + $0x8] sm:$0xff]
        %v446 = vld [vmem:[%s416 + $0x20] sm:$0xff]
        %v447 = vld [vmem:[%s416 + $0x38] sm:$0xff]
        %v448 = vld [vmem:[%s416 + $0x50] sm:$0xff]
        %v449 = vld [vmem:[%s1 + $0x7] sm:$0x1]
        %v450 = vperm.slane %v449, 0
        %v451 = vmul.f32 %v445, %v450
        %v452 = vmul.f32 %v446, %v450
        %v453 = vmul.f32 %v447, %v450
        %v454 = vmul.f32 %v448, %v450
        %v455 = vadd.f32 %v441, %v451
        %v456 = vadd.f32 %v442, %v452
        %v457 = vadd.f32 %v443, %v453
        %v458 = vadd.f32 %v444, %v454
        %v459 = vld [vmem:[%s416 + $0x9] sm:$0xff]
        %v460 = vld [vmem:[%s416 + $0x21] sm:$0xff]
        %v461 = vld [vmem:[%s416 + $0x39] sm:$0xff]
        %v462 = vld [vmem:[%s416 + $0x51] sm:$0xff]
        %v463 = vld [vmem:[%s1 + $0x8] sm:$0x1]
        %v464 = vperm.slane %v463, 0
        %v465 = vmul.f32 %v459, %v464
        %v466 = vmul.f32 %v460, %v464
        %v467 = vmul.f32 %v461, %v464
        %v468 = vmul.f32 %v462, %v464
        %v469 = vadd.f32 %v455, %v465
        %v470 = vadd.f32 %v456, %v466
        %v471 = vadd.f32 %v457, %v467
        %v472 = vadd.f32 %v458, %v468
        %v473 = vld [vmem:[%s416 + $0xa] sm:$0xff]
        %v474 = vld [vmem:[%s416 + $0x22] sm:$0xff]
        %v475 = vld [vmem:[%s416 + $0x3a] sm:$0xff]
        %v476 = vld [vmem:[%s416 + $0x52] sm:$0xff]
        %v477 = vld [vmem:[%s1 + $0x9] sm:$0x1]
        %v478 = vperm.slane %v477, 0
        %v479 = vmul.f32 %v473, %v478
        %v480 = vmul.f32 %v474, %v478
        %v481 = vmul.f32 %v475, %v478
        %v482 = vmul.f32 %v476, %v478
        %v483 = vadd.f32 %v469, %v479
        %v484 = vadd.f32 %v470, %v480
        %v485 = vadd.f32 %v471, %v481
        %v486 = vadd.f32 %v472, %v482
        %s487 = sadd.s32 %s341, 2
        %s488 = smul.u32 %s487, 24
        %s489 = scalar_lea.vmem [#allocation2], %s488
        %v490 = vld [vmem:[%s489 + $0x6] sm:$0xff]
        %v491 = vld [vmem:[%s489 + $0x1e] sm:$0xff]
        %v492 = vld [vmem:[%s489 + $0x36] sm:$0xff]
        %v493 = vld [vmem:[%s489 + $0x4e] sm:$0xff]
        %v494 = vld [vmem:[%s1 + $0xa] sm:$0x1]
        %v495 = vperm.slane %v494, 0
        %v496 = vmul.f32 %v490, %v495
        %v497 = vmul.f32 %v491, %v495
        %v498 = vmul.f32 %v492, %v495
        %v499 = vmul.f32 %v493, %v495
        %v500 = vadd.f32 %v483, %v496
        %v501 = vadd.f32 %v484, %v497
        %v502 = vadd.f32 %v485, %v498
        %v503 = vadd.f32 %v486, %v499
        %v504 = vld [vmem:[%s489 + $0x7] sm:$0xff]
        %v505 = vld [vmem:[%s489 + $0x1f] sm:$0xff]
        %v506 = vld [vmem:[%s489 + $0x37] sm:$0xff]
        %v507 = vld [vmem:[%s489 + $0x4f] sm:$0xff]
        %v508 = vld [vmem:[%s1 + $0xb] sm:$0x1]
        %v509 = vperm.slane %v508, 0
        %v510 = vmul.f32 %v504, %v509
        %v511 = vmul.f32 %v505, %v509
        %v512 = vmul.f32 %v506, %v509
        %v513 = vmul.f32 %v507, %v509
        %v514 = vadd.f32 %v500, %v510
        %v515 = vadd.f32 %v501, %v511
        %v516 = vadd.f32 %v502, %v512
        %v517 = vadd.f32 %v503, %v513
        %v518 = vld [vmem:[%s489 + $0x8] sm:$0xff]
        %v519 = vld [vmem:[%s489 + $0x20] sm:$0xff]
        %v520 = vld [vmem:[%s489 + $0x38] sm:$0xff]
        %v521 = vld [vmem:[%s489 + $0x50] sm:$0xff]
        %v522 = vld [vmem:[%s1 + $0xc] sm:$0x1]
        %v523 = vperm.slane %v522, 0
        %v524 = vmul.f32 %v518, %v523
        %v525 = vmul.f32 %v519, %v523
        %v526 = vmul.f32 %v520, %v523
        %v527 = vmul.f32 %v521, %v523
        %v528 = vadd.f32 %v514, %v524
        %v529 = vadd.f32 %v515, %v525
        %v530 = vadd.f32 %v516, %v526
        %v531 = vadd.f32 %v517, %v527
        %v532 = vld [vmem:[%s489 + $0x9] sm:$0xff]
        %v533 = vld [vmem:[%s489 + $0x21] sm:$0xff]
        %v534 = vld [vmem:[%s489 + $0x39] sm:$0xff]
        %v535 = vld [vmem:[%s489 + $0x51] sm:$0xff]
        %v536 = vld [vmem:[%s1 + $0xd] sm:$0x1]
        %v537 = vperm.slane %v536, 0
        %v538 = vmul.f32 %v532, %v537
        %v539 = vmul.f32 %v533, %v537
        %v540 = vmul.f32 %v534, %v537
        %v541 = vmul.f32 %v535, %v537
        %v542 = vadd.f32 %v528, %v538
        %v543 = vadd.f32 %v529, %v539
        %v544 = vadd.f32 %v530, %v540
        %v545 = vadd.f32 %v531, %v541
        %v546 = vld [vmem:[%s489 + $0xa] sm:$0xff]
        %v547 = vld [vmem:[%s489 + $0x22] sm:$0xff]
        %v548 = vld [vmem:[%s489 + $0x3a] sm:$0xff]
        %v549 = vld [vmem:[%s489 + $0x52] sm:$0xff]
        %v550 = vld [vmem:[%s1 + $0xe] sm:$0x1]
        %v551 = vperm.slane %v550, 0
        %v552 = vmul.f32 %v546, %v551
        %v553 = vmul.f32 %v547, %v551
        %v554 = vmul.f32 %v548, %v551
        %v555 = vmul.f32 %v549, %v551
        %v556 = vadd.f32 %v542, %v552
        %v557 = vadd.f32 %v543, %v553
        %v558 = vadd.f32 %v544, %v554
        %v559 = vadd.f32 %v545, %v555
        %s560 = sadd.s32 %s341, 3
        %s561 = smul.u32 %s560, 24
        %s562 = scalar_lea.vmem [#allocation2], %s561
        %v563 = vld [vmem:[%s562 + $0x6] sm:$0xff]
        %v564 = vld [vmem:[%s562 + $0x1e] sm:$0xff]
        %v565 = vld [vmem:[%s562 + $0x36] sm:$0xff]
        %v566 = vld [vmem:[%s562 + $0x4e] sm:$0xff]
        %v567 = vld [vmem:[%s1 + $0xf] sm:$0x1]
        %v568 = vperm.slane %v567, 0
        %v569 = vmul.f32 %v563, %v568
        %v570 = vmul.f32 %v564, %v568
        %v571 = vmul.f32 %v565, %v568
        %v572 = vmul.f32 %v566, %v568
        %v573 = vadd.f32 %v556, %v569
        %v574 = vadd.f32 %v557, %v570
        %v575 = vadd.f32 %v558, %v571
        %v576 = vadd.f32 %v559, %v572
        %v577 = vld [vmem:[%s562 + $0x7] sm:$0xff]
        %v578 = vld [vmem:[%s562 + $0x1f] sm:$0xff]
        %v579 = vld [vmem:[%s562 + $0x37] sm:$0xff]
        %v580 = vld [vmem:[%s562 + $0x4f] sm:$0xff]
        %v581 = vld [vmem:[%s1 + $0x10] sm:$0x1]
        %v582 = vperm.slane %v581, 0
        %v583 = vmul.f32 %v577, %v582
        %v584 = vmul.f32 %v578, %v582
        %v585 = vmul.f32 %v579, %v582
        %v586 = vmul.f32 %v580, %v582
        %v587 = vadd.f32 %v573, %v583
        %v588 = vadd.f32 %v574, %v584
        %v589 = vadd.f32 %v575, %v585
        %v590 = vadd.f32 %v576, %v586
        %v591 = vld [vmem:[%s562 + $0x8] sm:$0xff]
        %v592 = vld [vmem:[%s562 + $0x20] sm:$0xff]
        %v593 = vld [vmem:[%s562 + $0x38] sm:$0xff]
        %v594 = vld [vmem:[%s562 + $0x50] sm:$0xff]
        %v595 = vld [vmem:[%s1 + $0x11] sm:$0x1]
        %v596 = vperm.slane %v595, 0
        %v597 = vmul.f32 %v591, %v596
        %v598 = vmul.f32 %v592, %v596
        %v599 = vmul.f32 %v593, %v596
        %v600 = vmul.f32 %v594, %v596
        %v601 = vadd.f32 %v587, %v597
        %v602 = vadd.f32 %v588, %v598
        %v603 = vadd.f32 %v589, %v599
        %v604 = vadd.f32 %v590, %v600
        %v605 = vld [vmem:[%s562 + $0x9] sm:$0xff]
        %v606 = vld [vmem:[%s562 + $0x21] sm:$0xff]
        %v607 = vld [vmem:[%s562 + $0x39] sm:$0xff]
        %v608 = vld [vmem:[%s562 + $0x51] sm:$0xff]
        %v609 = vld [vmem:[%s1 + $0x12] sm:$0x1]
        %v610 = vperm.slane %v609, 0
        %v611 = vmul.f32 %v605, %v610
        %v612 = vmul.f32 %v606, %v610
        %v613 = vmul.f32 %v607, %v610
        %v614 = vmul.f32 %v608, %v610
        %v615 = vadd.f32 %v601, %v611
        %v616 = vadd.f32 %v602, %v612
        %v617 = vadd.f32 %v603, %v613
        %v618 = vadd.f32 %v604, %v614
        %v619 = vld [vmem:[%s562 + $0xa] sm:$0xff]
        %v620 = vld [vmem:[%s562 + $0x22] sm:$0xff]
        %v621 = vld [vmem:[%s562 + $0x3a] sm:$0xff]
        %v622 = vld [vmem:[%s562 + $0x52] sm:$0xff]
        %v623 = vld [vmem:[%s1 + $0x13] sm:$0x1]
        %v624 = vperm.slane %v623, 0
        %v625 = vmul.f32 %v619, %v624
        %v626 = vmul.f32 %v620, %v624
        %v627 = vmul.f32 %v621, %v624
        %v628 = vmul.f32 %v622, %v624
        %v629 = vadd.f32 %v615, %v625
        %v630 = vadd.f32 %v616, %v626
        %v631 = vadd.f32 %v617, %v627
        %v632 = vadd.f32 %v618, %v628
        %s633 = sadd.s32 %s341, 4
        %s634 = smul.u32 %s633, 24
        %s635 = scalar_lea.vmem [#allocation2], %s634
        %v636 = vld [vmem:[%s635 + $0x6] sm:$0xff]
        %v637 = vld [vmem:[%s635 + $0x1e] sm:$0xff]
        %v638 = vld [vmem:[%s635 + $0x36] sm:$0xff]
        %v639 = vld [vmem:[%s635 + $0x4e] sm:$0xff]
        %v640 = vld [vmem:[%s1 + $0x14] sm:$0x1]
        %v641 = vperm.slane %v640, 0
        %v642 = vmul.f32 %v636, %v641
        %v643 = vmul.f32 %v637, %v641
        %v644 = vmul.f32 %v638, %v641
        %v645 = vmul.f32 %v639, %v641
        %v646 = vadd.f32 %v629, %v642
        %v647 = vadd.f32 %v630, %v643
        %v648 = vadd.f32 %v631, %v644
        %v649 = vadd.f32 %v632, %v645
        %v650 = vld [vmem:[%s635 + $0x7] sm:$0xff]
        %v651 = vld [vmem:[%s635 + $0x1f] sm:$0xff]
        %v652 = vld [vmem:[%s635 + $0x37] sm:$0xff]
        %v653 = vld [vmem:[%s635 + $0x4f] sm:$0xff]
        %v654 = vld [vmem:[%s1 + $0x15] sm:$0x1]
        %v655 = vperm.slane %v654, 0
        %v656 = vmul.f32 %v650, %v655
        %v657 = vmul.f32 %v651, %v655
        %v658 = vmul.f32 %v652, %v655
        %v659 = vmul.f32 %v653, %v655
        %v660 = vadd.f32 %v646, %v656
        %v661 = vadd.f32 %v647, %v657
        %v662 = vadd.f32 %v648, %v658
        %v663 = vadd.f32 %v649, %v659
        %v664 = vld [vmem:[%s635 + $0x8] sm:$0xff]
        %v665 = vld [vmem:[%s635 + $0x20] sm:$0xff]
        %v666 = vld [vmem:[%s635 + $0x38] sm:$0xff]
        %v667 = vld [vmem:[%s635 + $0x50] sm:$0xff]
        %v668 = vld [vmem:[%s1 + $0x16] sm:$0x1]
        %v669 = vperm.slane %v668, 0
        %v670 = vmul.f32 %v664, %v669
        %v671 = vmul.f32 %v665, %v669
        %v672 = vmul.f32 %v666, %v669
        %v673 = vmul.f32 %v667, %v669
        %v674 = vadd.f32 %v660, %v670
        %v675 = vadd.f32 %v661, %v671
        %v676 = vadd.f32 %v662, %v672
        %v677 = vadd.f32 %v663, %v673
        %v678 = vld [vmem:[%s635 + $0x9] sm:$0xff]
        %v679 = vld [vmem:[%s635 + $0x21] sm:$0xff]
        %v680 = vld [vmem:[%s635 + $0x39] sm:$0xff]
        %v681 = vld [vmem:[%s635 + $0x51] sm:$0xff]
        %v682 = vld [vmem:[%s1 + $0x17] sm:$0x1]
        %v683 = vperm.slane %v682, 0
        %v684 = vmul.f32 %v678, %v683
        %v685 = vmul.f32 %v679, %v683
        %v686 = vmul.f32 %v680, %v683
        %v687 = vmul.f32 %v681, %v683
        %v688 = vadd.f32 %v674, %v684
        %v689 = vadd.f32 %v675, %v685
        %v690 = vadd.f32 %v676, %v686
        %v691 = vadd.f32 %v677, %v687
        %v692 = vld [vmem:[%s635 + $0xa] sm:$0xff]
        %v693 = vld [vmem:[%s635 + $0x22] sm:$0xff]
        %v694 = vld [vmem:[%s635 + $0x3a] sm:$0xff]
        %v695 = vld [vmem:[%s635 + $0x52] sm:$0xff]
        %v696 = vld [vmem:[%s1 + $0x18] sm:$0x1]
        %v697 = vperm.slane %v696, 0
        %v698 = vmul.f32 %v692, %v697
        %v699 = vmul.f32 %v693, %v697
        %v700 = vmul.f32 %v694, %v697
        %v701 = vmul.f32 %v695, %v697
        %v702 = vadd.f32 %v688, %v698
        %v703 = vadd.f32 %v689, %v699
        %v704 = vadd.f32 %v690, %v700
        %v705 = vadd.f32 %v691, %v701
        %v707 = vperm.slane %v333, 0
        %v709 = vmul.f32 %v702, %v707
        %v710 = vmul.f32 %v703, %v707
        %v711 = vmul.f32 %v704, %v707
        %v712 = vmul.f32 %v705, %v707
        %v714 = vperm.slane %v334, 0
        %v716 = vadd.f32 %v709, %v714
        %v717 = vadd.f32 %v710, %v714
        %v718 = vadd.f32 %v711, %v714
        %v719 = vadd.f32 %v712, %v714
        %v720 = vmax.f32 %v716, 0.0
        %v721 = vmax.f32 %v717, 0.0
        %v722 = vmax.f32 %v718, 0.0
        %v723 = vmax.f32 %v719, 0.0
        %v724 = vadd.f32 %v518, %v720
        %v725 = vadd.f32 %v519, %v721
        %v726 = vadd.f32 %v520, %v722
        %v727 = vadd.f32 %v521, %v723
        %s728 = smul.u32 %s341, 8
        %s729 = scalar_lea.vmem [#allocation3], %s728
        %730 = vst [vmem:[%s729] sm:$0xff] %v724
        %731 = vst [vmem:[%s729 + $0x8] sm:$0xff] %v725
        %732 = vst [vmem:[%s729 + $0x10] sm:$0xff] %v726
        %733 = vst [vmem:[%s729 + $0x18] sm:$0xff] %v727
      $region53: #{_lambda_.5} parent=47 // loop_footer
        %s340 = sadd.s32 1, %s336
      $region54: #{_lambda_.5} parent=47 // loop_footer_branch
        %335 = sbr.rel target = $region50
      $region55: #{_lambda_.5} parent=47 // loop_exit
        _
      %v734 = vld [vmem:[#allocation3] sm:$0xff]
      %v735 = vld [vmem:[#allocation3 + $0x8] sm:$0xff]
      %v736 = vld [vmem:[#allocation3 + $0x10] sm:$0xff]
      %v737 = vld [vmem:[#allocation3 + $0x18] sm:$0xff]
      %v738 = vld [vmem:[#allocation3 + $0x20] sm:$0xff]
      %v739 = vld [vmem:[#allocation3 + $0x28] sm:$0xff]
      %v740 = vld [vmem:[#allocation3 + $0x30] sm:$0xff]
      %v741 = vld [vmem:[#allocation3 + $0x38] sm:$0xff]
      %v742 = vld [vmem:[%s4] sm:$0xff]
      %v743 = vld [vmem:[%s4 + $0x8] sm:$0xff]
      %v744 = vld [vmem:[%s4 + $0x10] sm:$0xff]
      %v745 = vld [vmem:[%s4 + $0x18] sm:$0xff]
      %v746 = vld [vmem:[%s4 + $0x20] sm:$0xff]
      %v747 = vld [vmem:[%s4 + $0x28] sm:$0xff]
      %v748 = vld [vmem:[%s4 + $0x30] sm:$0xff]
      %v749 = vld [vmem:[%s4 + $0x38] sm:$0xff]
      %v750 = vld [vmem:[%s4 + $0x40] sm:$0xff]
      %v751 = vld [vmem:[%s4 + $0x48] sm:$0xff]
      %v752 = vld [vmem:[%s4 + $0x50] sm:$0xff]
      %v753 = vld [vmem:[%s4 + $0x58] sm:$0xff]
      %v754 = vld [vmem:[%s4 + $0x60] sm:$0xff]
      %v755 = vld [vmem:[%s4 + $0x68] sm:$0xff]
      %v756 = vld [vmem:[%s4 + $0x70] sm:$0xff]
      %v757 = vld [vmem:[%s4 + $0x78] sm:$0xff]
      %758 = vmatpush.msra.mxu0 %v757
      %759 = vmatpush.msra.mxu0 %v756
      %760 = vmatpush.msra.mxu0 %v755
      %761 = vmatpush.msra.mxu0 %v754
      %762 = vmatpush.msra.mxu0 %v753
      %763 = vmatpush.msra.mxu0 %v752
      %764 = vmatpush.msra.mxu0 %v751
      %765 = vmatpush.msra.mxu0 %v750
      %766 = vmatpush.msra.mxu0 %v749
      %767 = vmatpush.msra.mxu0 %v748
      %768 = vmatpush.msra.mxu0 %v747
      %769 = vmatpush.msra.mxu0 %v746
      %770 = vmatpush.msra.mxu0 %v745
      %771 = vmatpush.msra.mxu0 %v744
      %772 = vmatpush.msra.mxu0 %v743
      %773 = vmatpush.msra.mxu0 %v742
      %774 = vmatmul.f32.gmra.mxu0 %v734
      %v775 = vpop.f32.mrf.mxu0
      %v776 = vadd.f32 0.0, %v775
      %777 = vmatmul.f32.gmra.mxu0 %v735
      %v778 = vpop.f32.mrf.mxu0
      %v779 = vadd.f32 0.0, %v778
      %780 = vmatmul.f32.gmra.mxu0 %v736
      %v781 = vpop.f32.mrf.mxu0
      %v782 = vadd.f32 0.0, %v781
      %783 = vmatmul.f32.gmra.mxu0 %v737
      %v784 = vpop.f32.mrf.mxu0
      %v785 = vadd.f32 0.0, %v784
      %786 = vmatmul.f32.gmra.mxu0 %v738
      %v787 = vpop.f32.mrf.mxu0
      %v788 = vadd.f32 0.0, %v787
      %789 = vmatmul.f32.gmra.mxu0 %v739
      %v790 = vpop.f32.mrf.mxu0
      %v791 = vadd.f32 0.0, %v790
      %792 = vmatmul.f32.gmra.mxu0 %v740
      %v793 = vpop.f32.mrf.mxu0
      %v794 = vadd.f32 0.0, %v793
      %795 = vmatmul.f32.gmra.mxu0 %v741
      %v796 = vpop.f32.mrf.mxu0
      %v797 = vadd.f32 0.0, %v796
      %798 = vdwg.mxu0
      %v799 = vld [vmem:[%s5] sm:$0x1]
      %v801 = vperm.slane %v799, 0
      %v803 = vmul.f32 %v776, %v801
      %v804 = vmul.f32 %v779, %v801
      %v805 = vmul.f32 %v782, %v801
      %v806 = vmul.f32 %v785, %v801
      %v807 = vmul.f32 %v788, %v801
      %v808 = vmul.f32 %v791, %v801
      %v809 = vmul.f32 %v794, %v801
      %v810 = vmul.f32 %v797, %v801
      %v811 = vld [vmem:[%s6] sm:$0x1]
      %v813 = vperm.slane %v811, 0
      %v815 = vadd.f32 %v803, %v813
      %v816 = vadd.f32 %v804, %v813
      %v817 = vadd.f32 %v805, %v813
      %v818 = vadd.f32 %v806, %v813
      %v819 = vadd.f32 %v807, %v813
      %v820 = vadd.f32 %v808, %v813
      %v821 = vadd.f32 %v809, %v813
      %v822 = vadd.f32 %v810, %v813
      %v823 = vmax.f32 %v815, 0.0
      %v824 = vmax.f32 %v816, 0.0
      %v825 = vmax.f32 %v817, 0.0
      %v826 = vmax.f32 %v818, 0.0
      %v827 = vmax.f32 %v819, 0.0
      %v828 = vmax.f32 %v820, 0.0
      %v829 = vmax.f32 %v821, 0.0
      %v830 = vmax.f32 %v822, 0.0
      %831 = vst [vmem:[%s278] sm:$0xff] %v823
      %832 = vst [vmem:[%s278 + $0x8] sm:$0xff] %v824
      %833 = vst [vmem:[%s278 + $0x10] sm:$0xff] %v825
      %834 = vst [vmem:[%s278 + $0x18] sm:$0xff] %v826
      %835 = vst [vmem:[%s278 + $0x20] sm:$0xff] %v827
      %836 = vst [vmem:[%s278 + $0x28] sm:$0xff] %v828
      %837 = vst [vmem:[%s278 + $0x30] sm:$0xff] %v829
      %838 = vst [vmem:[%s278 + $0x38] sm:$0xff] %v830
      %p839 = scmp.lt.s32.totalorder %s18, 1
      %s840 = scalar_select %p839, %s18, 1
      %s841 = smul.addr %s840, 8
      %s842 = smul.addr %s841, 8
      %s843 = scalar_lea.vmem %s7, %s842
      // Predicated region
      $region56: #{_lambda_.5} parent=47 // pred_check
        %p844 = pneg %p188
      $region57: #{_lambda_.5} parent=47 // pred_check_branch
        %846 = sbr.rel (%p844) target = $region59
      $region58: #{_lambda_.5} parent=47 // pred_region
        _
      $region59: #{_lambda_.5} parent=47 // pred_fallthru
        _
    $region48: #{_lambda_.5} parent=5 // pred_fallthru
      _
    %p847 = scmp.le.s32.totalorder 2, %s13
    // Predicated region
    $region60: #{_lambda_.5} parent=5 // pred_check
      %p848 = pneg %p847
    $region61: #{_lambda_.5} parent=5 // pred_check_branch
      %850 = sbr.rel (%p848) target = $region63
    $region62: #{_lambda_.5} parent=5 // pred_region
      %s851 = ssub.s32 %s13, 2
      // Predicated region
      $region64: #{_lambda_.5} parent=62 // pred_check
        %p852 = pneg %p194
      $region65: #{_lambda_.5} parent=62 // pred_check_branch
        %854 = sbr.rel (%p852) target = $region67
      $region66: #{_lambda_.5} parent=62 // pred_region
        %p855 = scmp.lt.s32.totalorder %s19, 1
        %s856 = scalar_select %p855, %s19, 1
        %s857 = smul.addr %s856, 8
        %s858 = smul.addr %s857, 8
        %s859 = scalar_lea.vmem %s7, %s858
      $region67: #{_lambda_.5} parent=62 // pred_fallthru
        _
    $region63: #{_lambda_.5} parent=5 // pred_fallthru
      _
  $region6: #{_lambda_.5} parent=0 // loop_footer
    %s17 = sadd.s32 1, %s13
  $region7: #{_lambda_.5} parent=0 // loop_footer_branch
    %12 = sbr.rel target = $region3
  $region8: #{_lambda_.5} parent=0 // loop_exit
    _

// kernel: _lambda_.7
$region0: #{_lambda_.7}
  #allocation0 [shape = 'u32[]', space=smem, size = 0x4, offset = 0x4, fixed_abs, tag = 'smem constant byte address 0x4 - core index']
  #allocation1 [shape = 'u32[72,128]{1,0:T(1,128)}', space=vmem, size = 0x9000, scoped, tag = 'internal scratch']
  #allocation2 [shape = 'f32[8,128]{1,0:T(8,128)}', space=vmem, size = 0x1000, scoped, tag = 'scratch operand']
  %s0 = inlined_call_operand.vmem [shape: f32[8,64,128], index: 0, kind: input, shape index: {}]
  %s1 = inlined_call_operand.vmem [shape: f32[128,128], index: 1, kind: input, shape index: {}]
  %s2 = inlined_call_operand.vmem [shape: f32[1,128], index: 2, kind: input, shape index: {}]
  %s3 = inlined_call_operand.vmem [shape: f32[8,128], index: 3, kind: output, shape index: {}]
  %s4 = sld [smem:[#allocation0]]
  $region30: #{_lambda_.7} parent=0
    _
  %s6 = ssub.s32 1, %s4
  %s7 = scalar_select 0, %s6, %s4
  // Predicated region
  $region2: #{_lambda_.7} parent=0 // pred_check
    _
  $region3: #{_lambda_.7} parent=0 // pred_check_branch
    %9 = sbr.rel (0) target = $region5
  $region4: #{_lambda_.7} parent=0 // pred_region
    _
  $region5: #{_lambda_.7} parent=0 // pred_fallthru
    _
  // Predicated region
  $region6: #{_lambda_.7} parent=0 // pred_check
    _
  $region7: #{_lambda_.7} parent=0 // pred_check_branch
    %11 = sbr.rel (0) target = $region9
  $region8: #{_lambda_.7} parent=0 // pred_region
    _
  $region9: #{_lambda_.7} parent=0 // pred_fallthru
    _
  // Predicated region
  $region10: #{_lambda_.7} parent=0 // pred_check
    _
  $region11: #{_lambda_.7} parent=0 // pred_check_branch
    %13 = sbr.rel (0) target = $region13
  $region12: #{_lambda_.7} parent=0 // pred_region
    _
  $region13: #{_lambda_.7} parent=0 // pred_fallthru
    _
  %p14 = scmp.eq.s32.totalorder 0, 0
  // Predicated region
  $region14: #{_lambda_.7} parent=0 // pred_check
    %p15 = pneg %p14
  $region15: #{_lambda_.7} parent=0 // pred_check_branch
    %17 = sbr.rel (%p15) target = $region17
  $region16: #{_lambda_.7} parent=0 // pred_region
    %18 = vst [vmem:[#allocation2] sm:$0xff] -inf
  $region17: #{_lambda_.7} parent=0 // pred_fallthru
    _
  %v19 = vld [vmem:[#allocation2] sm:$0xff]
  %v20 = vld [vmem:[%s0] sm:$0xff]
  %v21 = vld [vmem:[%s0 + $0x8] sm:$0xff]
  %v22 = vld [vmem:[%s0 + $0x10] sm:$0xff]
  %v23 = vld [vmem:[%s0 + $0x18] sm:$0xff]
  %v24 = vld [vmem:[%s0 + $0x20] sm:$0xff]
  %v25 = vld [vmem:[%s0 + $0x28] sm:$0xff]
  %v26 = vld [vmem:[%s0 + $0x30] sm:$0xff]
  %v27 = vld [vmem:[%s0 + $0x38] sm:$0xff]
  %v28 = vld [vmem:[%s0 + $0x40] sm:$0xff]
  %v29 = vld [vmem:[%s0 + $0x48] sm:$0xff]
  %v30 = vld [vmem:[%s0 + $0x50] sm:$0xff]
  %v31 = vld [vmem:[%s0 + $0x58] sm:$0xff]
  %v32 = vld [vmem:[%s0 + $0x60] sm:$0xff]
  %v33 = vld [vmem:[%s0 + $0x68] sm:$0xff]
  %v34 = vld [vmem:[%s0 + $0x70] sm:$0xff]
  %v35 = vld [vmem:[%s0 + $0x78] sm:$0xff]
  %v36 = vld [vmem:[%s0 + $0x80] sm:$0xff]
  %v37 = vld [vmem:[%s0 + $0x88] sm:$0xff]
  %v38 = vld [vmem:[%s0 + $0x90] sm:$0xff]
  %v39 = vld [vmem:[%s0 + $0x98] sm:$0xff]
  %v40 = vld [vmem:[%s0 + $0xa0] sm:$0xff]
  %v41 = vld [vmem:[%s0 + $0xa8] sm:$0xff]
  %v42 = vld [vmem:[%s0 + $0xb0] sm:$0xff]
  %v43 = vld [vmem:[%s0 + $0xb8] sm:$0xff]
  %v44 = vld [vmem:[%s0 + $0xc0] sm:$0xff]
  %v45 = vld [vmem:[%s0 + $0xc8] sm:$0xff]
  %v46 = vld [vmem:[%s0 + $0xd0] sm:$0xff]
  %v47 = vld [vmem:[%s0 + $0xd8] sm:$0xff]
  %v48 = vld [vmem:[%s0 + $0xe0] sm:$0xff]
  %v49 = vld [vmem:[%s0 + $0xe8] sm:$0xff]
  %v50 = vld [vmem:[%s0 + $0xf0] sm:$0xff]
  %v51 = vld [vmem:[%s0 + $0xf8] sm:$0xff]
  %v52 = vld [vmem:[%s0 + $0x100] sm:$0xff]
  %v53 = vld [vmem:[%s0 + $0x108] sm:$0xff]
  %v54 = vld [vmem:[%s0 + $0x110] sm:$0xff]
  %v55 = vld [vmem:[%s0 + $0x118] sm:$0xff]
  %v56 = vld [vmem:[%s0 + $0x120] sm:$0xff]
  %v57 = vld [vmem:[%s0 + $0x128] sm:$0xff]
  %v58 = vld [vmem:[%s0 + $0x130] sm:$0xff]
  %v59 = vld [vmem:[%s0 + $0x138] sm:$0xff]
  %v60 = vld [vmem:[%s0 + $0x140] sm:$0xff]
  %v61 = vld [vmem:[%s0 + $0x148] sm:$0xff]
  %v62 = vld [vmem:[%s0 + $0x150] sm:$0xff]
  %v63 = vld [vmem:[%s0 + $0x158] sm:$0xff]
  %v64 = vld [vmem:[%s0 + $0x160] sm:$0xff]
  %v65 = vld [vmem:[%s0 + $0x168] sm:$0xff]
  %v66 = vld [vmem:[%s0 + $0x170] sm:$0xff]
  %v67 = vld [vmem:[%s0 + $0x178] sm:$0xff]
  %v68 = vld [vmem:[%s0 + $0x180] sm:$0xff]
  %v69 = vld [vmem:[%s0 + $0x188] sm:$0xff]
  %v70 = vld [vmem:[%s0 + $0x190] sm:$0xff]
  %v71 = vld [vmem:[%s0 + $0x198] sm:$0xff]
  %v72 = vld [vmem:[%s0 + $0x1a0] sm:$0xff]
  %v73 = vld [vmem:[%s0 + $0x1a8] sm:$0xff]
  %v74 = vld [vmem:[%s0 + $0x1b0] sm:$0xff]
  %v75 = vld [vmem:[%s0 + $0x1b8] sm:$0xff]
  %v76 = vld [vmem:[%s0 + $0x1c0] sm:$0xff]
  %v77 = vld [vmem:[%s0 + $0x1c8] sm:$0xff]
  %v78 = vld [vmem:[%s0 + $0x1d0] sm:$0xff]
  %v79 = vld [vmem:[%s0 + $0x1d8] sm:$0xff]
  %v80 = vld [vmem:[%s0 + $0x1e0] sm:$0xff]
  %v81 = vld [vmem:[%s0 + $0x1e8] sm:$0xff]
  %v82 = vld [vmem:[%s0 + $0x1f0] sm:$0xff]
  %v83 = vld [vmem:[%s0 + $0x1f8] sm:$0xff]
  %v84 = vmax.f32 %v20, %v21
  %v85 = vmax.f32 %v84, %v22
  %v86 = vmax.f32 %v85, %v23
  %v87 = vmax.f32 %v86, %v24
  %v88 = vmax.f32 %v87, %v25
  %v89 = vmax.f32 %v88, %v26
  %v90 = vmax.f32 %v89, %v27
  %v91 = vrot.slane %v90, 4
  %v92 = vmax.f32 %v90, %v91
  %v93 = vrot.slane %v92, 2
  %v94 = vmax.f32 %v92, %v93
  %v95 = vrot.slane %v94, 1
  %v96 = vmax.f32 %v94, %v95
  %v97 = vmax.f32 %v28, %v29
  %v98 = vmax.f32 %v97, %v30
  %v99 = vmax.f32 %v98, %v31
  %v100 = vmax.f32 %v99, %v32
  %v101 = vmax.f32 %v100, %v33
  %v102 = vmax.f32 %v101, %v34
  %v103 = vmax.f32 %v102, %v35
  %v104 = vrot.slane %v103, 4
  %v105 = vmax.f32 %v103, %v104
  %v106 = vrot.slane %v105, 2
  %v107 = vmax.f32 %v105, %v106
  %v108 = vrot.slane %v107, 1
  %v109 = vmax.f32 %v107, %v108
  %v110 = vmax.f32 %v36, %v37
  %v111 = vmax.f32 %v110, %v38
  %v112 = vmax.f32 %v111, %v39
  %v113 = vmax.f32 %v112, %v40
  %v114 = vmax.f32 %v113, %v41
  %v115 = vmax.f32 %v114, %v42
  %v116 = vmax.f32 %v115, %v43
  %v117 = vrot.slane %v116, 4
  %v118 = vmax.f32 %v116, %v117
  %v119 = vrot.slane %v118, 2
  %v120 = vmax.f32 %v118, %v119
  %v121 = vrot.slane %v120, 1
  %v122 = vmax.f32 %v120, %v121
  %v123 = vmax.f32 %v44, %v45
  %v124 = vmax.f32 %v123, %v46
  %v125 = vmax.f32 %v124, %v47
  %v126 = vmax.f32 %v125, %v48
  %v127 = vmax.f32 %v126, %v49
  %v128 = vmax.f32 %v127, %v50
  %v129 = vmax.f32 %v128, %v51
  %v130 = vrot.slane %v129, 4
  %v131 = vmax.f32 %v129, %v130
  %v132 = vrot.slane %v131, 2
  %v133 = vmax.f32 %v131, %v132
  %v134 = vrot.slane %v133, 1
  %v135 = vmax.f32 %v133, %v134
  %v136 = vmax.f32 %v52, %v53
  %v137 = vmax.f32 %v136, %v54
  %v138 = vmax.f32 %v137, %v55
  %v139 = vmax.f32 %v138, %v56
  %v140 = vmax.f32 %v139, %v57
  %v141 = vmax.f32 %v140, %v58
  %v142 = vmax.f32 %v141, %v59
  %v143 = vrot.slane %v142, 4
  %v144 = vmax.f32 %v142, %v143
  %v145 = vrot.slane %v144, 2
  %v146 = vmax.f32 %v144, %v145
  %v147 = vrot.slane %v146, 1
  %v148 = vmax.f32 %v146, %v147
  %v149 = vmax.f32 %v60, %v61
  %v150 = vmax.f32 %v149, %v62
  %v151 = vmax.f32 %v150, %v63
  %v152 = vmax.f32 %v151, %v64
  %v153 = vmax.f32 %v152, %v65
  %v154 = vmax.f32 %v153, %v66
  %v155 = vmax.f32 %v154, %v67
  %v156 = vrot.slane %v155, 4
  %v157 = vmax.f32 %v155, %v156
  %v158 = vrot.slane %v157, 2
  %v159 = vmax.f32 %v157, %v158
  %v160 = vrot.slane %v159, 1
  %v161 = vmax.f32 %v159, %v160
  %v162 = vmax.f32 %v68, %v69
  %v163 = vmax.f32 %v162, %v70
  %v164 = vmax.f32 %v163, %v71
  %v165 = vmax.f32 %v164, %v72
  %v166 = vmax.f32 %v165, %v73
  %v167 = vmax.f32 %v166, %v74
  %v168 = vmax.f32 %v167, %v75
  %v169 = vrot.slane %v168, 4
  %v170 = vmax.f32 %v168, %v169
  %v171 = vrot.slane %v170, 2
  %v172 = vmax.f32 %v170, %v171
  %v173 = vrot.slane %v172, 1
  %v174 = vmax.f32 %v172, %v173
  %v175 = vmax.f32 %v76, %v77
  %v176 = vmax.f32 %v175, %v78
  %v177 = vmax.f32 %v176, %v79
  %v178 = vmax.f32 %v177, %v80
  %v179 = vmax.f32 %v178, %v81
  %v180 = vmax.f32 %v179, %v82
  %v181 = vmax.f32 %v180, %v83
  %v182 = vrot.slane %v181, 4
  %v183 = vmax.f32 %v181, %v182
  %v184 = vrot.slane %v183, 2
  %v185 = vmax.f32 %v183, %v184
  %v186 = vrot.slane %v185, 1
  %v187 = vmax.f32 %v185, %v186
  %vm196 = vcmask 1041409
  %v197 = vsel %vm196, %v109, %v96
  %vm198 = vcmask 1042434
  %v199 = vsel %vm198, %v122, %v197
  %vm200 = vcmask 1043459
  %v201 = vsel %vm200, %v135, %v199
  %vm202 = vcmask 1044484
  %v203 = vsel %vm202, %v148, %v201
  %vm204 = vcmask 1045509
  %v205 = vsel %vm204, %v161, %v203
  %vm206 = vcmask 1046534
  %v207 = vsel %vm206, %v174, %v205
  %vm208 = vcmask 1047559
  %v209 = vsel %vm208, %v187, %v207
  %v211 = vmax.f32 %v19, %v209
  %212 = vst [vmem:[#allocation2] sm:$0xff] %v211
  // Predicated region
  $region18: #{_lambda_.7} parent=0 // pred_check
    %p213 = pneg %p14
  $region19: #{_lambda_.7} parent=0 // pred_check_branch
    %215 = sbr.rel (%p213) target = $region21
  $region20: #{_lambda_.7} parent=0 // pred_region
    %v216 = vld [vmem:[#allocation2] sm:$0xff]
    %v217 = vld [vmem:[%s1] sm:$0xff]
    %v218 = vld [vmem:[%s1 + $0x8] sm:$0xff]
    %v219 = vld [vmem:[%s1 + $0x10] sm:$0xff]
    %v220 = vld [vmem:[%s1 + $0x18] sm:$0xff]
    %v221 = vld [vmem:[%s1 + $0x20] sm:$0xff]
    %v222 = vld [vmem:[%s1 + $0x28] sm:$0xff]
    %v223 = vld [vmem:[%s1 + $0x30] sm:$0xff]
    %v224 = vld [vmem:[%s1 + $0x38] sm:$0xff]
    %v225 = vld [vmem:[%s1 + $0x40] sm:$0xff]
    %v226 = vld [vmem:[%s1 + $0x48] sm:$0xff]
    %v227 = vld [vmem:[%s1 + $0x50] sm:$0xff]
    %v228 = vld [vmem:[%s1 + $0x58] sm:$0xff]
    %v229 = vld [vmem:[%s1 + $0x60] sm:$0xff]
    %v230 = vld [vmem:[%s1 + $0x68] sm:$0xff]
    %v231 = vld [vmem:[%s1 + $0x70] sm:$0xff]
    %v232 = vld [vmem:[%s1 + $0x78] sm:$0xff]
    %v233 = vld [vmem:[%s2] sm:$0x1]
    %v235 = vperm.slane %v233, 0
    %237 = vmatpush.msra.mxu0 %v232
    %238 = vmatpush.msra.mxu0 %v231
    %239 = vmatpush.msra.mxu0 %v230
    %240 = vmatpush.msra.mxu0 %v229
    %241 = vmatpush.msra.mxu0 %v228
    %242 = vmatpush.msra.mxu0 %v227
    %243 = vmatpush.msra.mxu0 %v226
    %244 = vmatpush.msra.mxu0 %v225
    %245 = vmatpush.msra.mxu0 %v224
    %246 = vmatpush.msra.mxu0 %v223
    %247 = vmatpush.msra.mxu0 %v222
    %248 = vmatpush.msra.mxu0 %v221
    %249 = vmatpush.msra.mxu0 %v220
    %250 = vmatpush.msra.mxu0 %v219
    %251 = vmatpush.msra.mxu0 %v218
    %252 = vmatpush.msra.mxu0 %v217
    %253 = vmatmul.f32.gmra.mxu0 %v216
    %v254 = vpop.f32.mrf.mxu0
    %v255 = vadd.f32 %v235, %v254
    %256 = vdwg.mxu0
    %257 = vst [vmem:[%s3] sm:$0xff] %v255
  $region21: #{_lambda_.7} parent=0 // pred_fallthru
    _
  // Predicated region
  $region22: #{_lambda_.7} parent=0 // pred_check
    _
  $region23: #{_lambda_.7} parent=0 // pred_check_branch
    %259 = sbr.rel (0) target = $region25
  $region24: #{_lambda_.7} parent=0 // pred_region
    _
  $region25: #{_lambda_.7} parent=0 // pred_fallthru
    _
  // Predicated region
  $region26: #{_lambda_.7} parent=0 // pred_check
    _
  $region27: #{_lambda_.7} parent=0 // pred_check_branch
    %261 = sbr.rel (0) target = $region29
  $region28: #{_lambda_.7} parent=0 // pred_region
    _
  $region29: #{_lambda_.7} parent=0 // pred_fallthru
    _

</llo_original>
